<compile_context>
chip_gen: v5e
topology: v5e:2x2
jax: 0.10.0
libtpu: 0.0.40
codegen_flags: <defaults>
</compile_context>

<pallas_src>
import jax
import jax.numpy as jnp
from jax.experimental import pallas as pl
from jax.experimental.pallas import tpu as pltpu

# ---------------- synthetic small config (stands in for LLaMA-2 7B dims) ----
VOCAB = 128
D_MODEL = 128
D_MLP = 256
SEG0_LEN = 8
SEG1_LEN = 8
NUM_IMG_TOKENS = 16          # stands in for the 64 <ImageHere> query tokens
IMG_C, IMG_H, IMG_W = 3, 16, 16
PATCH = 4
PATCH_DIM = IMG_C * PATCH * PATCH                    # 48
PATCH_DIM_PAD = 64                                   # 48 data + 1 bias col + pad
SEQ_LEN = SEG0_LEN + NUM_IMG_TOKENS + SEG1_LEN       # 32 rows (no pad rows now)
T = SEQ_LEN
IGNORE_INDEX = -200
NO_TOKEN = -1                                        # sentinel: row has no text token
TRAIN_NUM = 2


def _resident_spec(shape):
    """Full-array block with a constant index_map -> stays VMEM-resident across grid."""
    n = len(shape)
    return pl.BlockSpec(shape, lambda b, _n=n: (0,) * _n)


# ---------------------------------------------------------------- kernel ----
def fused_forward_kernel(tok_ref, patches_ref, w_img_ref, emb_wo_lm_ref,
                         wqkv_ref, wgu_ref, wd_ref, rms_ref, out_ref):
    eps = jnp.float32(1e-6)
    D = D_MODEL
    V = VOCAB
    F = D_MLP

    def bdot(a_f32, w_bf16):
        # activations -> bf16 only at the MXU input, f32 accumulate
        return jnp.dot(a_f32.astype(jnp.bfloat16), w_bf16,
                       preferred_element_type=jnp.float32)

    rms = rms_ref[...]                                              # [8, D] f32

    def rmsnorm(h, row):
        var = jnp.mean(h * h, axis=-1, keepdims=True)
        return h * jax.lax.rsqrt(var + eps) * rms[row:row + 1, :]

    # ---- build the [T, D] activation slab (get_context_emb fused, no scratch) -
    tok = tok_ref[...]                                              # [T, 2] int32
    ids = tok[:, 0:1]                                               # [T, 1]
    labels = tok[:, 1:2]                                            # [T, 1]
    vcols = jax.lax.broadcasted_iota(jnp.int32, (T, V), 1)          # reused for CE

    # token-embedding "gather" as one-hot MXU matmul (image rows: NO_TOKEN -> 0)
    onehot = (vcols == ids).astype(jnp.bfloat16)                    # [T, V]
    x = jnp.dot(onehot, emb_wo_lm_ref[0],
                preferred_element_type=jnp.float32)                 # [T, D]
    # encode_img: zero-padded patch slab (bias folded in via ones-column) makes
    # the projection a plain additive matmul -- non-image rows contribute 0.
    x = x + bdot(patches_ref[...], w_img_ref[...])                  # [T, D]

    # ---- causal self-attention (single head) ---------------------------------
    h1 = rmsnorm(x, 0)
    qkv = bdot(h1, wqkv_ref[...])                                   # [T, 3D]
    q = qkv[:, 0:D]                                                 # 1/sqrt(D) folded
    k = qkv[:, D:2 * D]
    v = qkv[:, 2 * D:3 * D]
    # q @ k^T without materializing k.T (MXU consumes trans_b natively)
    s = jax.lax.dot_general(
        q.astype(jnp.bfloat16), k.astype(jnp.bfloat16),
        dimension_numbers=(((1,), (1,)), ((), ())),
        preferred_element_type=jnp.float32)                         # [T, T]
    rowi = jax.lax.broadcasted_iota(jnp.int32, (T, T), 0)
    coli = jax.lax.broadcasted_iota(jnp.int32, (T, T), 1)
    s = jnp.where(rowi >= coli, s, jnp.float32(-1e30))
    s = s - jnp.max(s, axis=-1, keepdims=True)
    p = jnp.exp(s)
    p = p * pl.reciprocal(jnp.sum(p, axis=-1, keepdims=True), approx=True)
    attn = jnp.dot(p.astype(jnp.bfloat16), v.astype(jnp.bfloat16),
                   preferred_element_type=jnp.float32)
    x = x + bdot(attn, emb_wo_lm_ref[1])

    # ---- SwiGLU MLP (gate/up fused weight) ------------------------------------
    h2 = rmsnorm(x, 1)
    gu = bdot(h2, wgu_ref[...])                                     # [T, 2F]
    gate = gu[:, 0:F]
    up = gu[:, F:2 * F]
    act = gate * jax.nn.sigmoid(gate) * up                          # silu(gate)*up
    x = x + bdot(act, wd_ref[...])

    # ---- final norm + LM head --------------------------------------------------
    hf = rmsnorm(x, 2)
    logits = bdot(hf, emb_wo_lm_ref[2])                             # [T, V] f32

    # ---- shifted cross-entropy, ignore_index=-200, mean over valid -------------
    m = jnp.max(logits, axis=-1, keepdims=True)
    lse = m + jnp.log(jnp.sum(jnp.exp(logits - m), axis=-1, keepdims=True))
    label_logit = jnp.sum(jnp.where(vcols == labels, logits, jnp.float32(0.0)),
                          axis=-1, keepdims=True)                   # [T, 1]
    valid = (labels != IGNORE_INDEX).astype(jnp.float32)            # [T, 1]
    nll = (lse - label_logit) * valid
    total = jnp.sum(nll, axis=0, keepdims=True)                     # [1, 1]
    count = jnp.maximum(jnp.sum(valid, axis=0, keepdims=True), jnp.float32(1.0))
    out_ref[...] = total / count                                    # exact division


def fused_lm_losses(tok, patches, p):
    """One batched pallas_call over all conversations -> per-sample loss [B]."""
    B = tok.shape[0]
    out = pl.pallas_call(
        fused_forward_kernel,
        grid=(B,),
        in_specs=[
            pl.BlockSpec((None, T, 2), lambda b: (b, 0, 0)),        # ids+labels
            _resident_spec((T, PATCH_DIM_PAD)),                     # patch slab
            _resident_spec((PATCH_DIM_PAD, D_MODEL)),               # w_img (+bias row)
            _resident_spec((3, D_MODEL, D_MODEL)),                  # embed / wo / w_lm
            _resident_spec((D_MODEL, 3 * D_MODEL)),                 # wqkv
            _resident_spec((D_MODEL, 2 * D_MLP)),                   # w_gate|w_up
            _resident_spec((D_MLP, D_MODEL)),                       # w_down
            _resident_spec((8, D_MODEL)),                           # rms1/rms2/rmsf
        ],
        out_specs=pl.BlockSpec((None, 1, 1), lambda b: (b, 0, 0)),
        out_shape=jax.ShapeDtypeStruct((B, 1, 1), jnp.float32),
        compiler_params=pltpu.CompilerParams(
            dimension_semantics=("parallel",)),
    )(tok, patches, p['w_img'], p['emb_wo_lm'], p['wqkv'], p['wgu'],
      p['wd'], p['rms'])
    return out[:, 0, 0]


# ------------------------------------------------------------------- glue ---
def image_to_patches_full(image):
    """NCHW [1,C,H,W] -> [T, PATCH_DIM_PAD] slab: image rows hold [patch | 1 | 0...],
    all other rows are zero (so patches @ w_img adds nothing on text rows)."""
    _, C, H, W = image.shape
    x = image[0].reshape(C, H // PATCH, PATCH, W // PATCH, PATCH)
    x = jnp.transpose(x, (1, 3, 0, 2, 4))                           # [Hp, Wp, C, ph, pw]
    patches = x.reshape((H // PATCH) * (W // PATCH), PATCH_DIM)     # [16, 48]
    aug = jnp.concatenate([
        patches,
        jnp.ones((NUM_IMG_TOKENS, 1), jnp.float32),                 # bias column
        jnp.zeros((NUM_IMG_TOKENS, PATCH_DIM_PAD - PATCH_DIM - 1), jnp.float32),
    ], axis=1)                                                      # [16, 64]
    full = jnp.zeros((T, PATCH_DIM_PAD), jnp.float32)
    return full.at[SEG0_LEN:SEG0_LEN + NUM_IMG_TOKENS].set(aug)


def init_params(key):
    ks = jax.random.split(key, 10)
    D = D_MODEL

    def w(k, shape, scale=0.02):
        # matmul weights live in bf16 (MXU-native on all current chips)
        return (scale * jax.random.normal(k, shape)).astype(jnp.bfloat16)

    # "llama_proj" of encode_img; bias folded in as row PATCH_DIM (ones-column trick)
    w_img = jnp.zeros((PATCH_DIM_PAD, D), jnp.float32)
    w_img = w_img.at[:PATCH_DIM].set(0.02 * jax.random.normal(ks[0], (PATCH_DIM, D)))
    w_img = w_img.at[PATCH_DIM].set(jnp.zeros((D,), jnp.float32))   # bias (zero)
    w_img = w_img.astype(jnp.bfloat16)

    embed = w(ks[1], (VOCAB, D))                                    # embed_tokens
    # fold 1/sqrt(D) attention scale into wq at init time
    wq = (0.02 * jax.random.normal(ks[2], (D, D)) * (1.0 / (D ** 0.5))
          ).astype(jnp.bfloat16)
    wk = w(ks[3], (D, D))
    wv = w(ks[4], (D, D))
    wo = w(ks[5], (D, D))
    w_gate = w(ks[6], (D, D_MLP))
    w_up = w(ks[7], (D, D_MLP))
    wd = w(ks[8], (D_MLP, D))
    w_lm = w(ks[9], (D, VOCAB))                                     # lm head

    rms = jnp.zeros((8, D), jnp.float32).at[0:3].set(1.0)           # rms1/rms2/rmsf

    return dict(
        w_img=w_img,
        emb_wo_lm=jnp.stack([embed, wo, w_lm], axis=0),             # [3, D, D]
        wqkv=jnp.concatenate([wq, wk, wv], axis=1),                 # [D, 3D]
        wgu=jnp.concatenate([w_gate, w_up], axis=1),                # [D, 2*D_MLP]
        wd=wd,
        rms=rms,
    )


def build_tok(key):
    """Deterministic stand-in for self.conv[k] tokenized prompts.
    Packs context ids (col 0) and shifted CE labels (col 1) per conversation."""
    toks = []
    for _ in range(TRAIN_NUM):
        k0, k1, key = jax.random.split(key, 3)
        seg0 = jax.random.randint(k0, (SEG0_LEN,), 0, VOCAB, dtype=jnp.int32)
        seg1 = jax.random.randint(k1, (SEG1_LEN,), 0, VOCAB, dtype=jnp.int32)
        ids_ctx = jnp.concatenate([
            seg0, jnp.full((NUM_IMG_TOKENS,), NO_TOKEN, jnp.int32), seg1])
        inputs_tokens = jnp.concatenate([
            seg0, jnp.full((NUM_IMG_TOKENS,), IGNORE_INDEX, jnp.int32), seg1])
        shift_labels = jnp.concatenate([
            inputs_tokens[1:], jnp.full((1,), IGNORE_INDEX, jnp.int32)])
        toks.append(jnp.stack([ids_ctx, shift_labels], axis=-1))    # [T, 2]
    return jnp.stack(toks, axis=0)                                  # [B, T, 2]


def minigpt_forward(params, tok_all, inp):
    images, k = inp
    # encode_img patchify stays as cheap XLA glue; the projection matmul is fused.
    patches = image_to_patches_full(images)                         # [32, 64] f32
    # one fused, batched Pallas kernel: embedding lookup + image proj + concat +
    # llama block + LM head + masked cross-entropy for every conversation
    losses = fused_lm_losses(tok_all, patches, params)              # [B]
    # TODO(synk): tokenizer / conversation-template string handling has no
    # numeric equivalent; token ids are synthesized deterministically instead.
    return -losses[k]


if __name__ == "__main__":
    key = jax.random.PRNGKey(0)
    kp, kc, ki = jax.random.split(key, 3)
    params = init_params(kp)
    tok_all = build_tok(kc)
    image = jax.random.normal(ki, (1, IMG_C, IMG_H, IMG_W), dtype=jnp.float32)

    out = minigpt_forward(params, tok_all, (image, 0))
    jax.block_until_ready(out)
    assert out.shape == ()
    assert bool(jnp.isfinite(out))
    print("KERNEL_OK")
</pallas_src>

<mosaic_0001>
module attributes {stable_mosaic.version = 11 : i64} {
  func.func @fused_forward_kernel(%arg0: i32, %arg1: memref<1x32x2xi32, #tpu.memory_space<vmem>>, %arg2: memref<32x64xf32, #tpu.memory_space<vmem>>, %arg3: memref<64x128xbf16, #tpu.memory_space<vmem>>, %arg4: memref<3x128x128xbf16, #tpu.memory_space<vmem>>, %arg5: memref<128x384xbf16, #tpu.memory_space<vmem>>, %arg6: memref<128x512xbf16, #tpu.memory_space<vmem>>, %arg7: memref<256x128xbf16, #tpu.memory_space<vmem>>, %arg8: memref<8x128xf32, #tpu.memory_space<vmem>>, %arg9: memref<1x1x1xf32, #tpu.memory_space<vmem>>) attributes {dimension_semantics = [#tpu.dimension_semantics<parallel>], iteration_bounds = array<i64: 2>, scalar_prefetch = 0 : i64, scratch_operands = 0 : i64, tpu.core_type = #tpu.core_type<tc>, window_params = [{transform_indices = @transform_0, window_bounds = array<i64: 1, 32, 2>}, {pipeline_mode = #tpu.pipeline_mode<synchronous>, transform_indices = @transform_1, window_bounds = array<i64: 32, 64>}, {pipeline_mode = #tpu.pipeline_mode<synchronous>, transform_indices = @transform_2, window_bounds = array<i64: 64, 128>}, {pipeline_mode = #tpu.pipeline_mode<synchronous>, transform_indices = @transform_3, window_bounds = array<i64: 3, 128, 128>}, {pipeline_mode = #tpu.pipeline_mode<synchronous>, transform_indices = @transform_4, window_bounds = array<i64: 128, 384>}, {pipeline_mode = #tpu.pipeline_mode<synchronous>, transform_indices = @transform_5, window_bounds = array<i64: 128, 512>}, {pipeline_mode = #tpu.pipeline_mode<synchronous>, transform_indices = @transform_6, window_bounds = array<i64: 256, 128>}, {pipeline_mode = #tpu.pipeline_mode<synchronous>, transform_indices = @transform_7, window_bounds = array<i64: 8, 128>}, {transform_indices = @transform_8, window_bounds = array<i64: 1, 1, 1>}]} {
    %c0 = arith.constant 0 : index
    %c0_0 = arith.constant 0 : index
    %0 = vector.load %arg8[%c0, %c0_0] : memref<8x128xf32, #tpu.memory_space<vmem>>, vector<8x128xf32>
    %c0_1 = arith.constant 0 : index
    %c0_2 = arith.constant 0 : index
    %c0_3 = arith.constant 0 : index
    %1 = vector.load %arg1[%c0_1, %c0_2, %c0_3] : memref<1x32x2xi32, #tpu.memory_space<vmem>>, vector<1x32x2xi32>
    %2 = vector.shape_cast %1 : vector<1x32x2xi32> to vector<32x2xi32>
    %3 = vector.extract_strided_slice %2 {offsets = [0, 0], sizes = [32, 1], strides = [1, 1]} : vector<32x2xi32> to vector<32x1xi32>
    %4 = vector.extract_strided_slice %2 {offsets = [0, 1], sizes = [32, 1], strides = [1, 1]} : vector<32x2xi32> to vector<32x1xi32>
    %5 = tpu.iota {dimensions = array<i32: 1>} : vector<32x128xi32>
    %6 = vector.broadcast %3 : vector<32x1xi32> to vector<32x128xi32>
    %7 = arith.cmpi eq, %5, %6 : vector<32x128xi32>
    %8 = arith.extui %7 : vector<32x128xi1> to vector<32x128xi32>
    %9 = arith.sitofp %8 : vector<32x128xi32> to vector<32x128xf32>
    %10 = arith.truncf %9 : vector<32x128xf32> to vector<32x128xbf16>
    %c0_4 = arith.constant 0 : index
    %c0_5 = arith.constant 0 : index
    %c0_6 = arith.constant 0 : index
    %11 = vector.load %arg4[%c0_4, %c0_5, %c0_6] : memref<3x128x128xbf16, #tpu.memory_space<vmem>>, vector<1x128x128xbf16>
    %12 = vector.shape_cast %11 : vector<1x128x128xbf16> to vector<128x128xbf16>
    %cst = arith.constant dense<0.000000e+00> : vector<32x128xf32>
    %13 = tpu.matmul %10, %12, %cst {dimension_numbers = #tpu.dot_dimension_numbers<[1], [0], [0], [1], [0, 0, 1, 1], [], []>} : vector<32x128xbf16>, vector<128x128xbf16>, vector<32x128xf32> -> vector<32x128xf32>
    %c0_7 = arith.constant 0 : index
    %c0_8 = arith.constant 0 : index
    %14 = vector.load %arg2[%c0_7, %c0_8] : memref<32x64xf32, #tpu.memory_space<vmem>>, vector<32x64xf32>
    %c0_9 = arith.constant 0 : index
    %c0_10 = arith.constant 0 : index
    %15 = vector.load %arg3[%c0_9, %c0_10] : memref<64x128xbf16, #tpu.memory_space<vmem>>, vector<64x128xbf16>
    %16 = arith.truncf %14 : vector<32x64xf32> to vector<32x64xbf16>
    %cst_11 = arith.constant dense<0.000000e+00> : vector<32x128xf32>
    %17 = tpu.matmul %16, %15, %cst_11 {dimension_numbers = #tpu.dot_dimension_numbers<[1], [0], [0], [1], [0, 0, 1, 1], [], []>} : vector<32x64xbf16>, vector<64x128xbf16>, vector<32x128xf32> -> vector<32x128xf32>
    %18 = arith.addf %13, %17 : vector<32x128xf32>
    %19 = arith.mulf %18, %18 : vector<32x128xf32>
    %cst_12 = arith.constant dense<0.000000e+00> : vector<32xf32>
    %20 = vector.multi_reduction <add>, %19, %cst_12 [1] : vector<32x128xf32> to vector<32xf32>
    %21 = vector.shape_cast %20 : vector<32xf32> to vector<32x1xf32>
    %cst_13 = arith.constant 1.280000e+02 : f32
    %22 = vector.broadcast %cst_13 : f32 to vector<32x1xf32>
    %23 = arith.divf %21, %22 : vector<32x1xf32>
    %cst_14 = arith.constant 9.99999997E-7 : f32
    %24 = vector.broadcast %cst_14 : f32 to vector<32x1xf32>
    %25 = arith.addf %23, %24 : vector<32x1xf32>
    %26 = math.rsqrt %25 : vector<32x1xf32>
    %27 = vector.broadcast %26 : vector<32x1xf32> to vector<32x128xf32>
    %28 = arith.mulf %18, %27 : vector<32x128xf32>
    %29 = vector.extract_strided_slice %0 {offsets = [0, 0], sizes = [1, 128], strides = [1, 1]} : vector<8x128xf32> to vector<1x128xf32>
    %30 = vector.broadcast %29 : vector<1x128xf32> to vector<32x128xf32>
    %31 = arith.mulf %28, %30 : vector<32x128xf32>
    %c0_15 = arith.constant 0 : index
    %c0_16 = arith.constant 0 : index
    %32 = vector.load %arg5[%c0_15, %c0_16] : memref<128x384xbf16, #tpu.memory_space<vmem>>, vector<128x384xbf16>
    %33 = arith.truncf %31 : vector<32x128xf32> to vector<32x128xbf16>
    %cst_17 = arith.constant dense<0.000000e+00> : vector<32x384xf32>
    %34 = tpu.matmul %33, %32, %cst_17 {dimension_numbers = #tpu.dot_dimension_numbers<[1], [0], [0], [1], [0, 0, 1, 1], [], []>} : vector<32x128xbf16>, vector<128x384xbf16>, vector<32x384xf32> -> vector<32x384xf32>
    %35 = vector.extract_strided_slice %34 {offsets = [0, 0], sizes = [32, 128], strides = [1, 1]} : vector<32x384xf32> to vector<32x128xf32>
    %36 = vector.extract_strided_slice %34 {offsets = [0, 128], sizes = [32, 128], strides = [1, 1]} : vector<32x384xf32> to vector<32x128xf32>
    %37 = vector.extract_strided_slice %34 {offsets = [0, 256], sizes = [32, 128], strides = [1, 1]} : vector<32x384xf32> to vector<32x128xf32>
    %38 = arith.truncf %35 : vector<32x128xf32> to vector<32x128xbf16>
    %39 = arith.truncf %36 : vector<32x128xf32> to vector<32x128xbf16>
    %cst_18 = arith.constant dense<0.000000e+00> : vector<32x32xf32>
    %40 = tpu.matmul %38, %39, %cst_18 {dimension_numbers = #tpu.dot_dimension_numbers<[1], [1], [0], [0], [0, 0, 1, 0], [], []>} : vector<32x128xbf16>, vector<32x128xbf16>, vector<32x32xf32> -> vector<32x32xf32>
    %41 = tpu.iota {dimensions = array<i32: 0>} : vector<32x32xi32>
    %42 = tpu.iota {dimensions = array<i32: 1>} : vector<32x32xi32>
    %43 = arith.cmpi sge, %41, %42 : vector<32x32xi32>
    %cst_19 = arith.constant -1.000000e+30 : f32
    %44 = vector.broadcast %cst_19 : f32 to vector<32x32xf32>
    %45 = arith.select %43, %40, %44 : vector<32x32xi1>, vector<32x32xf32>
    %cst_20 = arith.constant dense<0xFF800000> : vector<32xf32>
    %46 = vector.multi_reduction <maximumf>, %45, %cst_20 [1] : vector<32x32xf32> to vector<32xf32>
    %47 = vector.shape_cast %46 : vector<32xf32> to vector<32x1xf32>
    %48 = vector.broadcast %47 : vector<32x1xf32> to vector<32x32xf32>
    %49 = arith.subf %45, %48 : vector<32x32xf32>
    %50 = math.exp %49 : vector<32x32xf32>
    %cst_21 = arith.constant dense<0.000000e+00> : vector<32xf32>
    %51 = vector.multi_reduction <add>, %50, %cst_21 [1] : vector<32x32xf32> to vector<32xf32>
    %52 = vector.shape_cast %51 : vector<32xf32> to vector<32x1xf32>
    %53 = tpu.reciprocal %52 {approx = true} : vector<32x1xf32> -> vector<32x1xf32>
    %54 = vector.broadcast %53 : vector<32x1xf32> to vector<32x32xf32>
    %55 = arith.mulf %50, %54 : vector<32x32xf32>
    %56 = arith.truncf %55 : vector<32x32xf32> to vector<32x32xbf16>
    %57 = arith.truncf %37 : vector<32x128xf32> to vector<32x128xbf16>
    %cst_22 = arith.constant dense<0.000000e+00> : vector<32x128xf32>
    %58 = tpu.matmul %56, %57, %cst_22 {dimension_numbers = #tpu.dot_dimension_numbers<[1], [0], [0], [1], [0, 0, 1, 1], [], []>} : vector<32x32xbf16>, vector<32x128xbf16>, vector<32x128xf32> -> vector<32x128xf32>
    %c1 = arith.constant 1 : index
    %c0_23 = arith.constant 0 : index
    %c0_24 = arith.constant 0 : index
    %59 = vector.load %arg4[%c1, %c0_23, %c0_24] : memref<3x128x128xbf16, #tpu.memory_space<vmem>>, vector<1x128x128xbf16>
    %60 = vector.shape_cast %59 : vector<1x128x128xbf16> to vector<128x128xbf16>
    %61 = arith.truncf %58 : vector<32x128xf32> to vector<32x128xbf16>
    %cst_25 = arith.constant dense<0.000000e+00> : vector<32x128xf32>
    %62 = tpu.matmul %61, %60, %cst_25 {dimension_numbers = #tpu.dot_dimension_numbers<[1], [0], [0], [1], [0, 0, 1, 1], [], []>} : vector<32x128xbf16>, vector<128x128xbf16>, vector<32x128xf32> -> vector<32x128xf32>
    %63 = arith.addf %18, %62 : vector<32x128xf32>
    %64 = arith.mulf %63, %63 : vector<32x128xf32>
    %cst_26 = arith.constant dense<0.000000e+00> : vector<32xf32>
    %65 = vector.multi_reduction <add>, %64, %cst_26 [1] : vector<32x128xf32> to vector<32xf32>
    %66 = vector.shape_cast %65 : vector<32xf32> to vector<32x1xf32>
    %cst_27 = arith.constant 1.280000e+02 : f32
    %67 = vector.broadcast %cst_27 : f32 to vector<32x1xf32>
    %68 = arith.divf %66, %67 : vector<32x1xf32>
    %cst_28 = arith.constant 9.99999997E-7 : f32
    %69 = vector.broadcast %cst_28 : f32 to vector<32x1xf32>
    %70 = arith.addf %68, %69 : vector<32x1xf32>
    %71 = math.rsqrt %70 : vector<32x1xf32>
    %72 = vector.broadcast %71 : vector<32x1xf32> to vector<32x128xf32>
    %73 = arith.mulf %63, %72 : vector<32x128xf32>
    %74 = vector.extract_strided_slice %0 {offsets = [1, 0], sizes = [1, 128], strides = [1, 1]} : vector<8x128xf32> to vector<1x128xf32>
    %75 = vector.broadcast %74 : vector<1x128xf32> to vector<32x128xf32>
    %76 = arith.mulf %73, %75 : vector<32x128xf32>
    %c0_29 = arith.constant 0 : index
    %c0_30 = arith.constant 0 : index
    %77 = vector.load %arg6[%c0_29, %c0_30] : memref<128x512xbf16, #tpu.memory_space<vmem>>, vector<128x512xbf16>
    %78 = arith.truncf %76 : vector<32x128xf32> to vector<32x128xbf16>
    %cst_31 = arith.constant dense<0.000000e+00> : vector<32x512xf32>
    %79 = tpu.matmul %78, %77, %cst_31 {dimension_numbers = #tpu.dot_dimension_numbers<[1], [0], [0], [1], [0, 0, 1, 1], [], []>} : vector<32x128xbf16>, vector<128x512xbf16>, vector<32x512xf32> -> vector<32x512xf32>
    %80 = vector.extract_strided_slice %79 {offsets = [0, 0], sizes = [32, 256], strides = [1, 1]} : vector<32x512xf32> to vector<32x256xf32>
    %81 = vector.extract_strided_slice %79 {offsets = [0, 256], sizes = [32, 256], strides = [1, 1]} : vector<32x512xf32> to vector<32x256xf32>
    %82 = arith.negf %80 : vector<32x256xf32>
    %83 = math.exp %82 : vector<32x256xf32>
    %cst_32 = arith.constant 1.000000e+00 : f32
    %84 = vector.broadcast %cst_32 : f32 to vector<32x256xf32>
    %85 = arith.addf %84, %83 : vector<32x256xf32>
    %86 = arith.divf %84, %85 : vector<32x256xf32>
    %87 = arith.mulf %80, %86 : vector<32x256xf32>
    %88 = arith.mulf %87, %81 : vector<32x256xf32>
    %c0_33 = arith.constant 0 : index
    %c0_34 = arith.constant 0 : index
    %89 = vector.load %arg7[%c0_33, %c0_34] : memref<256x128xbf16, #tpu.memory_space<vmem>>, vector<256x128xbf16>
    %90 = arith.truncf %88 : vector<32x256xf32> to vector<32x256xbf16>
    %cst_35 = arith.constant dense<0.000000e+00> : vector<32x128xf32>
    %91 = tpu.matmul %90, %89, %cst_35 {dimension_numbers = #tpu.dot_dimension_numbers<[1], [0], [0], [1], [0, 0, 1, 1], [], []>} : vector<32x256xbf16>, vector<256x128xbf16>, vector<32x128xf32> -> vector<32x128xf32>
    %92 = arith.addf %63, %91 : vector<32x128xf32>
    %93 = arith.mulf %92, %92 : vector<32x128xf32>
    %cst_36 = arith.constant dense<0.000000e+00> : vector<32xf32>
    %94 = vector.multi_reduction <add>, %93, %cst_36 [1] : vector<32x128xf32> to vector<32xf32>
    %95 = vector.shape_cast %94 : vector<32xf32> to vector<32x1xf32>
    %cst_37 = arith.constant 1.280000e+02 : f32
    %96 = vector.broadcast %cst_37 : f32 to vector<32x1xf32>
    %97 = arith.divf %95, %96 : vector<32x1xf32>
    %cst_38 = arith.constant 9.99999997E-7 : f32
    %98 = vector.broadcast %cst_38 : f32 to vector<32x1xf32>
    %99 = arith.addf %97, %98 : vector<32x1xf32>
    %100 = math.rsqrt %99 : vector<32x1xf32>
    %101 = vector.broadcast %100 : vector<32x1xf32> to vector<32x128xf32>
    %102 = arith.mulf %92, %101 : vector<32x128xf32>
    %103 = vector.extract_strided_slice %0 {offsets = [2, 0], sizes = [1, 128], strides = [1, 1]} : vector<8x128xf32> to vector<1x128xf32>
    %104 = vector.broadcast %103 : vector<1x128xf32> to vector<32x128xf32>
    %105 = arith.mulf %102, %104 : vector<32x128xf32>
    %c2 = arith.constant 2 : index
    %c0_39 = arith.constant 0 : index
    %c0_40 = arith.constant 0 : index
    %106 = vector.load %arg4[%c2, %c0_39, %c0_40] : memref<3x128x128xbf16, #tpu.memory_space<vmem>>, vector<1x128x128xbf16>
    %107 = vector.shape_cast %106 : vector<1x128x128xbf16> to vector<128x128xbf16>
    %108 = arith.truncf %105 : vector<32x128xf32> to vector<32x128xbf16>
    %cst_41 = arith.constant dense<0.000000e+00> : vector<32x128xf32>
    %109 = tpu.matmul %108, %107, %cst_41 {dimension_numbers = #tpu.dot_dimension_numbers<[1], [0], [0], [1], [0, 0, 1, 1], [], []>} : vector<32x128xbf16>, vector<128x128xbf16>, vector<32x128xf32> -> vector<32x128xf32>
    %cst_42 = arith.constant dense<0xFF800000> : vector<32xf32>
    %110 = vector.multi_reduction <maximumf>, %109, %cst_42 [1] : vector<32x128xf32> to vector<32xf32>
    %111 = vector.shape_cast %110 : vector<32xf32> to vector<32x1xf32>
    %112 = vector.broadcast %111 : vector<32x1xf32> to vector<32x128xf32>
    %113 = arith.subf %109, %112 : vector<32x128xf32>
    %114 = math.exp %113 : vector<32x128xf32>
    %cst_43 = arith.constant dense<0.000000e+00> : vector<32xf32>
    %115 = vector.multi_reduction <add>, %114, %cst_43 [1] : vector<32x128xf32> to vector<32xf32>
    %116 = vector.shape_cast %115 : vector<32xf32> to vector<32x1xf32>
    %117 = math.log %116 : vector<32x1xf32>
    %118 = arith.addf %111, %117 : vector<32x1xf32>
    %119 = vector.broadcast %4 : vector<32x1xi32> to vector<32x128xi32>
    %120 = arith.cmpi eq, %5, %119 : vector<32x128xi32>
    %cst_44 = arith.constant 0.000000e+00 : f32
    %121 = vector.broadcast %cst_44 : f32 to vector<32x128xf32>
    %122 = arith.select %120, %109, %121 : vector<32x128xi1>, vector<32x128xf32>
    %cst_45 = arith.constant dense<0.000000e+00> : vector<32xf32>
    %123 = vector.multi_reduction <add>, %122, %cst_45 [1] : vector<32x128xf32> to vector<32xf32>
    %124 = vector.shape_cast %123 : vector<32xf32> to vector<32x1xf32>
    %c-200_i32 = arith.constant -200 : i32
    %125 = vector.broadcast %c-200_i32 : i32 to vector<32x1xi32>
    %126 = arith.cmpi ne, %4, %125 : vector<32x1xi32>
    %127 = arith.extui %126 : vector<32x1xi1> to vector<32x1xi32>
    %128 = arith.sitofp %127 : vector<32x1xi32> to vector<32x1xf32>
    %129 = arith.subf %118, %124 : vector<32x1xf32>
    %130 = arith.mulf %129, %128 : vector<32x1xf32>
    %cst_46 = arith.constant dense<0.000000e+00> : vector<1xf32>
    %131 = vector.multi_reduction <add>, %130, %cst_46 [0] : vector<32x1xf32> to vector<1xf32>
    %132 = vector.shape_cast %131 : vector<1xf32> to vector<1x1xf32>
    %cst_47 = arith.constant dense<0.000000e+00> : vector<1xf32>
    %133 = vector.multi_reduction <add>, %128, %cst_47 [0] : vector<32x1xf32> to vector<1xf32>
    %134 = vector.shape_cast %133 : vector<1xf32> to vector<1x1xf32>
    %cst_48 = arith.constant 1.000000e+00 : f32
    %135 = vector.broadcast %cst_48 : f32 to vector<1x1xf32>
    %136 = arith.maximumf %134, %135 : vector<1x1xf32>
    %137 = arith.divf %132, %136 : vector<1x1xf32>
    %c0_49 = arith.constant 0 : index
    %c0_50 = arith.constant 0 : index
    %c0_51 = arith.constant 0 : index
    %138 = vector.load %arg9[%c0_49, %c0_50, %c0_51] : memref<1x1x1xf32, #tpu.memory_space<vmem>>, vector<1x1x1xf32>
    %139 = vector.shape_cast %138 : vector<1x1x1xf32> to vector<1x1xf32>
    %140 = vector.shape_cast %137 : vector<1x1xf32> to vector<1x1x1xf32>
    tpu.vector_store %arg9[%c0_49, %c0_50, %c0_51], %140 {strides = array<i32>} : memref<1x1x1xf32, #tpu.memory_space<vmem>>, vector<1x1x1xf32>,
    return
  }
  func.func @transform_0(%arg0: i32) -> (i32, i32, i32) {
    %c0_i32 = arith.constant 0 : i32
    %c0_i32_0 = arith.constant 0 : i32
    %c0_i32_1 = arith.constant 0 : i32
    return %arg0, %c0_i32, %c0_i32_0 : i32, i32, i32
  }
  func.func @transform_1(%arg0: i32) -> (i32, i32) {
    %c0_i32 = arith.constant 0 : i32
    %c0_i32_0 = arith.constant 0 : i32
    %c0_i32_1 = arith.constant 0 : i32
    return %c0_i32, %c0_i32_0 : i32, i32
  }
  func.func @transform_2(%arg0: i32) -> (i32, i32) {
    %c0_i32 = arith.constant 0 : i32
    %c0_i32_0 = arith.constant 0 : i32
    %c0_i32_1 = arith.constant 0 : i32
    return %c0_i32, %c0_i32_0 : i32, i32
  }
  func.func @transform_3(%arg0: i32) -> (i32, i32, i32) {
    %c0_i32 = arith.constant 0 : i32
    %c0_i32_0 = arith.constant 0 : i32
    %c0_i32_1 = arith.constant 0 : i32
    %c0_i32_2 = arith.constant 0 : i32
    return %c0_i32, %c0_i32_0, %c0_i32_1 : i32, i32, i32
  }
  func.func @transform_4(%arg0: i32) -> (i32, i32) {
    %c0_i32 = arith.constant 0 : i32
    %c0_i32_0 = arith.constant 0 : i32
    %c0_i32_1 = arith.constant 0 : i32
    return %c0_i32, %c0_i32_0 : i32, i32
  }
  func.func @transform_5(%arg0: i32) -> (i32, i32) {
    %c0_i32 = arith.constant 0 : i32
    %c0_i32_0 = arith.constant 0 : i32
    %c0_i32_1 = arith.constant 0 : i32
    return %c0_i32, %c0_i32_0 : i32, i32
  }
  func.func @transform_6(%arg0: i32) -> (i32, i32) {
    %c0_i32 = arith.constant 0 : i32
    %c0_i32_0 = arith.constant 0 : i32
    %c0_i32_1 = arith.constant 0 : i32
    return %c0_i32, %c0_i32_0 : i32, i32
  }
  func.func @transform_7(%arg0: i32) -> (i32, i32) {
    %c0_i32 = arith.constant 0 : i32
    %c0_i32_0 = arith.constant 0 : i32
    %c0_i32_1 = arith.constant 0 : i32
    return %c0_i32, %c0_i32_0 : i32, i32
  }
  func.func @transform_8(%arg0: i32) -> (i32, i32, i32) {
    %c0_i32 = arith.constant 0 : i32
    %c0_i32_0 = arith.constant 0 : i32
    %c0_i32_1 = arith.constant 0 : i32
    return %arg0, %c0_i32, %c0_i32_0 : i32, i32, i32
  }
}

</mosaic_0001>

<llo_original>
// kernel: tpu_custom_call.1
$region0: #{tpu_custom_call.1}
  #allocation0 [shape = 'u32[]', space=smem, size = 0x4, offset = 0x4, fixed_abs, tag = 'smem constant byte address 0x4 - core index']
  #allocation1 [shape = 'u32[72,128]{1,0:T(1,128)}', space=vmem, size = 0x9000, scoped, tag = 'internal scratch']
  %s0 = inlined_call_operand.vmem [shape: s32[2,32,2], index: 0, kind: input, shape index: {}]
  %s1 = inlined_call_operand.vmem [shape: f32[32,64], index: 1, kind: input, shape index: {}]
  %s2 = inlined_call_operand.vmem [shape: bf16[64,128], index: 2, kind: input, shape index: {}]
  %s3 = inlined_call_operand.hbm [shape: bf16[3,128,128], index: 3, kind: input, shape index: {}]
  %s4 = inlined_call_operand.hbm [shape: bf16[128,384], index: 4, kind: input, shape index: {}]
  %s5 = inlined_call_operand.hbm [shape: bf16[128,512], index: 5, kind: input, shape index: {}]
  %s6 = inlined_call_operand.hbm [shape: bf16[256,128], index: 6, kind: input, shape index: {}]
  %s7 = inlined_call_operand.vmem [shape: f32[8,128], index: 7, kind: input, shape index: {}]
  %s8 = inlined_call_operand.vmem [shape: f32[2,1,1], index: 8, kind: output, shape index: {}]
  %s9 = sld [smem:[#allocation0]]
  $region81: #{tpu_custom_call.1} parent=0
    _
  %s11 = ssub.s32 1, %s9
  %s12 = scalar_select 0, %s11, %s9
  $region1: #{tpu_custom_call.1} parent=0
    #allocation2 [shape = 'u8[98304]{0}', space=vmem, size = 0x18000, scoped, tag = 'input window, operand 3, single buffered']
    #allocation3 [shape = 's32[2]{0}', space=sflag, size = 0x8, scoped, tag = 'scoped memory for tpu_custom_call.1']
    #allocation4 [shape = 'u8[98304]{0}', space=vmem, size = 0x18000, scoped, tag = 'input window, operand 4, single buffered']
    #allocation5 [shape = 's32[1]{0}', space=sflag, size = 0x4, scoped, tag = 'scoped memory for tpu_custom_call.1']
    #allocation6 [shape = 'u8[131072]{0}', space=vmem, size = 0x20000, scoped, tag = 'input window, operand 5, single buffered']
    #allocation7 [shape = 'u8[65536]{0}', space=vmem, size = 0x10000, scoped, tag = 'input window, operand 6, single buffered']
    #allocation8 [shape = 's32[1]{0}', space=sflag, size = 0x4, scoped, tag = 'scoped memory for tpu_custom_call.1']
    %13 = vsyncpa [#allocation3], 0
    %14 = vsyncpa [#allocation5], 0
    %15 = vsyncpa [#allocation8], 0
    loop: start=0, step=1, limit=4
    $region2: #{tpu_custom_call.1} parent=1 // loop_pre_header
      _
    $region3: #{tpu_custom_call.1} parent=1 // loop_header
      %s17 = sphi 0, %s21
      %p18 = scmp.ge.s32.totalorder %s17, 4
      %s27 = sphi 0, %s29
      %s30 = sphi 0, %s27
      %s31 = sphi 0, %s30
      %s47 = sphi 0, %s31
      %s51 = sphi 0, %s51
      %s53 = sphi 0, %s51
      %s54 = sphi 0, %s53
      %s68 = sphi 0, %s54
      %s72 = sphi 0, %s72
      %s74 = sphi 0, %s72
      %s75 = sphi 0, %s74
      %s89 = sphi 0, %s75
      %s93 = sphi 0, %s93
      %s95 = sphi 0, %s93
      %s96 = sphi 0, %s95
      %s110 = sphi 0, %s96
      %s114 = sphi 0, %s114
      %s116 = sphi 0, %s114
      %s117 = sphi 0, %s116
      %s131 = sphi 0, %s117
      %s135 = sphi 0, %s135
      %s137 = sphi 0, %s135
      %s138 = sphi 0, %s137
      %s152 = sphi 0, %s138
      %s156 = sphi 0, %s156
      %s158 = sphi 0, %s156
      %s159 = sphi 0, %s158
      %s173 = sphi 0, %s159
      %s177 = sphi 0, %s177
      %s179 = sphi 0, %s177
      %s180 = sphi 0, %s179
      %s194 = sphi 0, %s180
      %s200 = sphi 0, %s202
      %s203 = sphi 0, %s200
      %s204 = sphi 0, %s203
      %s220 = sphi 0, %s204
    $region4: #{tpu_custom_call.1} parent=1 // loop_header_branch
      %20 = sbr.rel (%p18) target = $region8
    $region5: #{tpu_custom_call.1} parent=1 // loop_body
      %s22 = ssub.s32 %s17, 1
      %s23 = ssub.s32 %s17, 2
      %s24 = sadd.s32 %s17, 1
      %s25 = ssub.s32 %s17, %s24
      %p26 = scmp.eq.s32.totalorder %s25, 0
      %s28 = sadd.s32 %s27, 1
      %s29 = scalar_select %p26, %s27, %s28
      %p32 = pneg %p26
      %p33 = scmp.eq.s32.totalorder %s17, 1
      %p34 = por %p32, %p33
      %p35 = scmp.ne.s32.totalorder %s27, %s30
      %p36 = scmp.eq.s32.totalorder %s17, 0
      %p37 = por %p35, %p36
      %p38 = scmp.ne.s32.totalorder %s27, %s30
      %p39 = scmp.eq.s32.totalorder %s22, 1
      %p40 = por %p38, %p39
      %p41 = scmp.ne.s32.totalorder %s30, %s31
      %p42 = scmp.eq.s32.totalorder %s22, 0
      %p43 = por %p41, %p42
      %p44 = scmp.ne.s32.totalorder %s30, %s31
      %p45 = scmp.eq.s32.totalorder %s23, 1
      %p46 = por %p44, %p45
      %p48 = scmp.ne.s32.totalorder %s31, %s47
      %p49 = scmp.eq.s32.totalorder %s23, 0
      %p50 = por %p48, %p49
      %s52 = sadd.s32 %s51, 1
      %p55 = scmp.eq.s32.totalorder %s17, 1
      %p56 = scmp.ne.s32.totalorder %s51, %s53
      %p57 = scmp.eq.s32.totalorder %s17, 0
      %p58 = por %p56, %p57
      %p59 = scmp.ne.s32.totalorder %s51, %s53
      %p60 = scmp.eq.s32.totalorder %s22, 1
      %p61 = por %p59, %p60
      %p62 = scmp.ne.s32.totalorder %s53, %s54
      %p63 = scmp.eq.s32.totalorder %s22, 0
      %p64 = por %p62, %p63
      %p65 = scmp.ne.s32.totalorder %s53, %s54
      %p66 = scmp.eq.s32.totalorder %s23, 1
      %p67 = por %p65, %p66
      %p69 = scmp.ne.s32.totalorder %s54, %s68
      %p70 = scmp.eq.s32.totalorder %s23, 0
      %p71 = por %p69, %p70
      %s73 = sadd.s32 %s72, 1
      %p76 = scmp.eq.s32.totalorder %s17, 1
      %p77 = scmp.ne.s32.totalorder %s72, %s74
      %p78 = scmp.eq.s32.totalorder %s17, 0
      %p79 = por %p77, %p78
      %p80 = scmp.ne.s32.totalorder %s72, %s74
      %p81 = scmp.eq.s32.totalorder %s22, 1
      %p82 = por %p80, %p81
      %p83 = scmp.ne.s32.totalorder %s74, %s75
      %p84 = scmp.eq.s32.totalorder %s22, 0
      %p85 = por %p83, %p84
      %p86 = scmp.ne.s32.totalorder %s74, %s75
      %p87 = scmp.eq.s32.totalorder %s23, 1
      %p88 = por %p86, %p87
      %p90 = scmp.ne.s32.totalorder %s75, %s89
      %p91 = scmp.eq.s32.totalorder %s23, 0
      %p92 = por %p90, %p91
      %s94 = sadd.s32 %s93, 1
      %p97 = scmp.eq.s32.totalorder %s17, 1
      %p98 = scmp.ne.s32.totalorder %s93, %s95
      %p99 = scmp.eq.s32.totalorder %s17, 0
      %p100 = por %p98, %p99
      %p101 = scmp.ne.s32.totalorder %s93, %s95
      %p102 = scmp.eq.s32.totalorder %s22, 1
      %p103 = por %p101, %p102
      %p104 = scmp.ne.s32.totalorder %s95, %s96
      %p105 = scmp.eq.s32.totalorder %s22, 0
      %p106 = por %p104, %p105
      %p107 = scmp.ne.s32.totalorder %s95, %s96
      %p108 = scmp.eq.s32.totalorder %s23, 1
      %p109 = por %p107, %p108
      %p111 = scmp.ne.s32.totalorder %s96, %s110
      %p112 = scmp.eq.s32.totalorder %s23, 0
      %p113 = por %p111, %p112
      %s115 = sadd.s32 %s114, 1
      %p118 = scmp.eq.s32.totalorder %s17, 1
      %p119 = scmp.ne.s32.totalorder %s114, %s116
      %p120 = scmp.eq.s32.totalorder %s17, 0
      %p121 = por %p119, %p120
      %p122 = scmp.ne.s32.totalorder %s114, %s116
      %p123 = scmp.eq.s32.totalorder %s22, 1
      %p124 = por %p122, %p123
      %p125 = scmp.ne.s32.totalorder %s116, %s117
      %p126 = scmp.eq.s32.totalorder %s22, 0
      %p127 = por %p125, %p126
      %p128 = scmp.ne.s32.totalorder %s116, %s117
      %p129 = scmp.eq.s32.totalorder %s23, 1
      %p130 = por %p128, %p129
      %p132 = scmp.ne.s32.totalorder %s117, %s131
      %p133 = scmp.eq.s32.totalorder %s23, 0
      %p134 = por %p132, %p133
      %s136 = sadd.s32 %s135, 1
      %p139 = scmp.eq.s32.totalorder %s17, 1
      %p140 = scmp.ne.s32.totalorder %s135, %s137
      %p141 = scmp.eq.s32.totalorder %s17, 0
      %p142 = por %p140, %p141
      %p143 = scmp.ne.s32.totalorder %s135, %s137
      %p144 = scmp.eq.s32.totalorder %s22, 1
      %p145 = por %p143, %p144
      %p146 = scmp.ne.s32.totalorder %s137, %s138
      %p147 = scmp.eq.s32.totalorder %s22, 0
      %p148 = por %p146, %p147
      %p149 = scmp.ne.s32.totalorder %s137, %s138
      %p150 = scmp.eq.s32.totalorder %s23, 1
      %p151 = por %p149, %p150
      %p153 = scmp.ne.s32.totalorder %s138, %s152
      %p154 = scmp.eq.s32.totalorder %s23, 0
      %p155 = por %p153, %p154
      %s157 = sadd.s32 %s156, 1
      %p160 = scmp.eq.s32.totalorder %s17, 1
      %p161 = scmp.ne.s32.totalorder %s156, %s158
      %p162 = scmp.eq.s32.totalorder %s17, 0
      %p163 = por %p161, %p162
      %p164 = scmp.ne.s32.totalorder %s156, %s158
      %p165 = scmp.eq.s32.totalorder %s22, 1
      %p166 = por %p164, %p165
      %p167 = scmp.ne.s32.totalorder %s158, %s159
      %p168 = scmp.eq.s32.totalorder %s22, 0
      %p169 = por %p167, %p168
      %p170 = scmp.ne.s32.totalorder %s158, %s159
      %p171 = scmp.eq.s32.totalorder %s23, 1
      %p172 = por %p170, %p171
      %p174 = scmp.ne.s32.totalorder %s159, %s173
      %p175 = scmp.eq.s32.totalorder %s23, 0
      %p176 = por %p174, %p175
      %s178 = sadd.s32 %s177, 1
      %p181 = scmp.eq.s32.totalorder %s17, 1
      %p182 = scmp.ne.s32.totalorder %s177, %s179
      %p183 = scmp.eq.s32.totalorder %s17, 0
      %p184 = por %p182, %p183
      %p185 = scmp.ne.s32.totalorder %s177, %s179
      %p186 = scmp.eq.s32.totalorder %s22, 1
      %p187 = por %p185, %p186
      %p188 = scmp.ne.s32.totalorder %s179, %s180
      %p189 = scmp.eq.s32.totalorder %s22, 0
      %p190 = por %p188, %p189
      %p191 = scmp.ne.s32.totalorder %s179, %s180
      %p192 = scmp.eq.s32.totalorder %s23, 1
      %p193 = por %p191, %p192
      %p195 = scmp.ne.s32.totalorder %s180, %s194
      %p196 = scmp.eq.s32.totalorder %s23, 0
      %p197 = por %p195, %p196
      %s198 = ssub.s32 %s17, %s24
      %p199 = scmp.eq.s32.totalorder %s198, 0
      %s201 = sadd.s32 %s200, 1
      %s202 = scalar_select %p199, %s200, %s201
      %p205 = pneg %p199
      %p206 = scmp.eq.s32.totalorder %s17, 1
      %p207 = por %p205, %p206
      %p208 = scmp.ne.s32.totalorder %s200, %s203
      %p209 = scmp.eq.s32.totalorder %s17, 0
      %p210 = por %p208, %p209
      %p211 = scmp.ne.s32.totalorder %s200, %s203
      %p212 = scmp.eq.s32.totalorder %s22, 1
      %p213 = por %p211, %p212
      %p214 = scmp.ne.s32.totalorder %s203, %s204
      %p215 = scmp.eq.s32.totalorder %s22, 0
      %p216 = por %p214, %p215
      %p217 = scmp.ne.s32.totalorder %s203, %s204
      %p218 = scmp.eq.s32.totalorder %s23, 1
      %p219 = por %p217, %p218
      %p221 = scmp.ne.s32.totalorder %s204, %s220
      %p222 = scmp.eq.s32.totalorder %s23, 0
      %p223 = por %p221, %p222
      %p224 = scmp.le.s32.totalorder 1, %s17
      %p225 = scmp.lt.s32.totalorder %s17, 3
      %p226 = pnand %p224, %p225
      %p227 = pneg %p226
      // Predicated region
      $region9: #{tpu_custom_call.1} parent=5 // pred_check
        _
      $region10: #{tpu_custom_call.1} parent=5 // pred_check_branch
        %229 = sbr.rel (%p226) target = $region12
      $region11: #{tpu_custom_call.1} parent=5 // pred_region
        %s230 = ssub.s32 %s17, 1
        // Predicated region
        $region13: #{tpu_custom_call.1} parent=11 // pred_check
          %p231 = pneg %p64
        $region14: #{tpu_custom_call.1} parent=11 // pred_check_branch
          %233 = sbr.rel (%p231) target = $region16
        $region15: #{tpu_custom_call.1} parent=11 // pred_region
          _
        $region16: #{tpu_custom_call.1} parent=11 // pred_fallthru
          _
        // Predicated region
        $region17: #{tpu_custom_call.1} parent=11 // pred_check
          %p234 = pneg %p85
        $region18: #{tpu_custom_call.1} parent=11 // pred_check_branch
          %236 = sbr.rel (%p234) target = $region20
        $region19: #{tpu_custom_call.1} parent=11 // pred_region
          _
        $region20: #{tpu_custom_call.1} parent=11 // pred_fallthru
          _
        // Predicated region
        $region21: #{tpu_custom_call.1} parent=11 // pred_check
          %p237 = pneg %p106
        $region22: #{tpu_custom_call.1} parent=11 // pred_check_branch
          %239 = sbr.rel (%p237) target = $region24
        $region23: #{tpu_custom_call.1} parent=11 // pred_region
          %241 = vsyncadd [#allocation3], 0
          %s242 = sshll.u32 %s3, 4
          %s243 = int_to_ptr.hbm [resolvable:$true] %s242
          %s244 = sshll.u32 [#allocation2], 4
          %s245 = int_to_ptr.vmem [resolvable:$true] %s244
          %250 = dma.hbm_to_vmem [thread:$0]  %s243, 3072, %s245, [#allocation3], 64, 64, 4
        $region24: #{tpu_custom_call.1} parent=11 // pred_fallthru
          _
        // Predicated region
        $region25: #{tpu_custom_call.1} parent=11 // pred_check
          %p251 = pneg %p127
        $region26: #{tpu_custom_call.1} parent=11 // pred_check_branch
          %253 = sbr.rel (%p251) target = $region28
        $region27: #{tpu_custom_call.1} parent=11 // pred_region
          %255 = vsyncadd [#allocation5], 0
          %s256 = sshll.u32 %s4, 4
          %s257 = int_to_ptr.hbm [resolvable:$true] %s256
          %s258 = sshll.u32 [#allocation4], 4
          %s259 = int_to_ptr.vmem [resolvable:$true] %s258
          %264 = dma.hbm_to_vmem [thread:$0]  %s257, 3072, %s259, [#allocation5], 192, 192, 12
        $region28: #{tpu_custom_call.1} parent=11 // pred_fallthru
          _
        // Predicated region
        $region29: #{tpu_custom_call.1} parent=11 // pred_check
          %p265 = pneg %p148
        $region30: #{tpu_custom_call.1} parent=11 // pred_check_branch
          %267 = sbr.rel (%p265) target = $region32
        $region31: #{tpu_custom_call.1} parent=11 // pred_region
          %269 = vsyncadd [#allocation5], 0
          %s270 = sshll.u32 %s5, 4
          %s271 = int_to_ptr.hbm [resolvable:$true] %s270
          %s272 = sshll.u32 [#allocation6], 4
          %s273 = int_to_ptr.vmem [resolvable:$true] %s272
          %278 = dma.hbm_to_vmem [thread:$0]  %s271, 4096, %s273, [#allocation5], 256, 256, 16
        $region32: #{tpu_custom_call.1} parent=11 // pred_fallthru
          _
        // Predicated region
        $region33: #{tpu_custom_call.1} parent=11 // pred_check
          %p279 = pneg %p169
        $region34: #{tpu_custom_call.1} parent=11 // pred_check_branch
          %281 = sbr.rel (%p279) target = $region36
        $region35: #{tpu_custom_call.1} parent=11 // pred_region
          %283 = vsyncadd [#allocation8], 0
          %s284 = sshll.u32 %s6, 4
          %s285 = int_to_ptr.hbm [resolvable:$true] %s284
          %s286 = sshll.u32 [#allocation7], 4
          %s287 = int_to_ptr.vmem [resolvable:$true] %s286
          %292 = dma.hbm_to_vmem [thread:$0]  %s285, 2048, %s287, [#allocation8], 64, 64, 4
        $region36: #{tpu_custom_call.1} parent=11 // pred_fallthru
          _
        // Predicated region
        $region37: #{tpu_custom_call.1} parent=11 // pred_check
          %p293 = pneg %p190
        $region38: #{tpu_custom_call.1} parent=11 // pred_check_branch
          %295 = sbr.rel (%p293) target = $region40
        $region39: #{tpu_custom_call.1} parent=11 // pred_region
          _
        $region40: #{tpu_custom_call.1} parent=11 // pred_fallthru
          _
      $region12: #{tpu_custom_call.1} parent=5 // pred_fallthru
        _
      %p296 = scmp.lt.s32.totalorder %s17, 2
      // Predicated region
      $region41: #{tpu_custom_call.1} parent=5 // pred_check
        %p297 = pneg %p296
      $region42: #{tpu_custom_call.1} parent=5 // pred_check_branch
        %299 = sbr.rel (%p297) target = $region44
      $region43: #{tpu_custom_call.1} parent=5 // pred_region
        // Predicated region
        $region45: #{tpu_custom_call.1} parent=43 // pred_check
          %p300 = pneg %p37
        $region46: #{tpu_custom_call.1} parent=43 // pred_check_branch
          %302 = sbr.rel (%p300) target = $region48
        $region47: #{tpu_custom_call.1} parent=43 // pred_region
          %p303 = scmp.lt.s32.totalorder %s17, 1
          %s304 = scalar_select %p303, %s17, 1
          %s305 = smul.addr %s304, 4
          %s306 = smul.addr %s305, 8
          %s307 = scalar_lea.vmem %s0, %s306
        $region48: #{tpu_custom_call.1} parent=43 // pred_fallthru
          _
      $region44: #{tpu_custom_call.1} parent=5 // pred_fallthru
        _
      %p308 = scmp.le.s32.totalorder 1, %s17
      %p309 = scmp.lt.s32.totalorder %s17, 3
      %p310 = pnand %p308, %p309
      %p311 = pneg %p310
      // Predicated region
      $region49: #{tpu_custom_call.1} parent=5 // pred_check
        _
      $region50: #{tpu_custom_call.1} parent=5 // pred_check_branch
        %313 = sbr.rel (%p310) target = $region52
      $region51: #{tpu_custom_call.1} parent=5 // pred_region
        %s314 = ssub.s32 %s17, 1
        // Predicated region
        $region53: #{tpu_custom_call.1} parent=51 // pred_check
          %p315 = pneg %p106
        $region54: #{tpu_custom_call.1} parent=51 // pred_check_branch
          %317 = sbr.rel (%p315) target = $region56
        $region55: #{tpu_custom_call.1} parent=51 // pred_region
          %319 = dma.done [#allocation3], 3072
        $region56: #{tpu_custom_call.1} parent=51 // pred_fallthru
          _
        // Predicated region
        $region57: #{tpu_custom_call.1} parent=51 // pred_check
          %p320 = pneg %p127
        $region58: #{tpu_custom_call.1} parent=51 // pred_check_branch
          %322 = sbr.rel (%p320) target = $region60
        $region59: #{tpu_custom_call.1} parent=51 // pred_region
          %324 = dma.done [#allocation5], 3072
        $region60: #{tpu_custom_call.1} parent=51 // pred_fallthru
          _
        // Predicated region
        $region61: #{tpu_custom_call.1} parent=51 // pred_check
          %p325 = pneg %p148
        $region62: #{tpu_custom_call.1} parent=51 // pred_check_branch
          %327 = sbr.rel (%p325) target = $region64
        $region63: #{tpu_custom_call.1} parent=51 // pred_region
          %329 = dma.done [#allocation5], 4096
        $region64: #{tpu_custom_call.1} parent=51 // pred_fallthru
          _
        // Predicated region
        $region65: #{tpu_custom_call.1} parent=51 // pred_check
          %p330 = pneg %p169
        $region66: #{tpu_custom_call.1} parent=51 // pred_check_branch
          %332 = sbr.rel (%p330) target = $region68
        $region67: #{tpu_custom_call.1} parent=51 // pred_region
          %334 = dma.done [#allocation8], 2048
        $region68: #{tpu_custom_call.1} parent=51 // pred_fallthru
          _
        %p335 = scmp.lt.s32.totalorder %s22, 1
        %s336 = scalar_select %p335, %s22, 1
        %s337 = smul.addr %s336, 4
        %s338 = smul.addr %s337, 8
        %s339 = scalar_lea.vmem %s0, %s338
        %p340 = pneg %p43
        %p341 = pneg %p40
        %p342 = pneg %p64
        %p343 = pneg %p61
        %p344 = pneg %p85
        %p345 = pneg %p82
        %p346 = pneg %p106
        %p347 = pneg %p103
        %p348 = pneg %p127
        %p349 = pneg %p124
        %p350 = pneg %p148
        %p351 = pneg %p145
        %p352 = pneg %p169
        %p353 = pneg %p166
        %p354 = pneg %p190
        %p355 = pneg %p187
        %p356 = pneg %p216
        %p357 = pneg %p213
        %p358 = scmp.lt.s32.totalorder %s22, 1
        %s359 = scalar_select %p358, %s22, 1
        %s360 = scalar_lea.vmem %s8, %s359
        %p361 = scmp.lt.s32.totalorder %s22, 1
        %s362 = scalar_select %p361, %s22, 1
        %s363 = smul.addr %s362, 4
        %s364 = smul.addr %s363, 8
        %s365 = scalar_lea.vmem %s0, %s364
        %p366 = scmp.lt.s32.totalorder %s22, 1
        %s367 = scalar_select %p366, %s22, 1
        %s368 = scalar_lea.vmem %s8, %s367
        %v370 = vld [vmem:[%s7] sm:$0xff]
        %v371 = vld [vmem:[%s365] sm:$0xff]
        %v372 = vld [vmem:[%s365 + $0x8] sm:$0xff]
        %v373 = vld [vmem:[%s365 + $0x10] sm:$0xff]
        %v374 = vld [vmem:[%s365 + $0x18] sm:$0xff]
        %v375 = vlaneseq
        %v376 = vand.u32 %v375, 127
        %377 = vset.pattern.permute.xlu0 0
        %378 = vperm.xlu0 %377, %v371
        %v379 = vpop.permute.xlu0 %378
        %380 = vset.pattern.permute.xlu0 0
        %381 = vperm.xlu0 %380, %v372
        %v382 = vpop.permute.xlu0 %381
        %383 = vset.pattern.permute.xlu0 0
        %384 = vperm.xlu0 %383, %v373
        %v385 = vpop.permute.xlu0 %384
        %386 = vset.pattern.permute.xlu0 0
        %387 = vperm.xlu0 %386, %v374
        %v388 = vpop.permute.xlu0 %387
        %vm389 = vcmp.eq.s32.totalorder %v376, %v379
        %vm390 = vcmp.eq.s32.totalorder %v376, %v382
        %vm391 = vcmp.eq.s32.totalorder %v376, %v385
        %vm392 = vcmp.eq.s32.totalorder %v376, %v388
        %v393 = vsel %vm389, 1, 0
        %v394 = vsel %vm390, 1, 0
        %v395 = vsel %vm391, 1, 0
        %v396 = vsel %vm392, 1, 0
        %v397 = vcvt.s32.f32 %v393
        %v398 = vcvt.s32.f32 %v394
        %v399 = vcvt.s32.f32 %v395
        %v400 = vcvt.s32.f32 %v396
        %v401 = vpack.c.bf16 %v398, %v397
        %v402 = vpack.c.bf16 %v400, %v399
        %v403 = vld [vmem:[#allocation2] sm:$0xf]
        %v404 = vld [vmem:[#allocation2 + $0x4] sm:$0xf]
        %v405 = vld [vmem:[#allocation2 + $0x8] sm:$0xf]
        %v406 = vld [vmem:[#allocation2 + $0xc] sm:$0xf]
        %v407 = vld [vmem:[#allocation2 + $0x10] sm:$0xf]
        %v408 = vld [vmem:[#allocation2 + $0x14] sm:$0xf]
        %v409 = vld [vmem:[#allocation2 + $0x18] sm:$0xf]
        %v410 = vld [vmem:[#allocation2 + $0x1c] sm:$0xf]
        %v411 = vld [vmem:[#allocation2 + $0x20] sm:$0xf]
        %v412 = vld [vmem:[#allocation2 + $0x24] sm:$0xf]
        %v413 = vld [vmem:[#allocation2 + $0x28] sm:$0xf]
        %v414 = vld [vmem:[#allocation2 + $0x2c] sm:$0xf]
        %v415 = vld [vmem:[#allocation2 + $0x30] sm:$0xf]
        %v416 = vld [vmem:[#allocation2 + $0x34] sm:$0xf]
        %v417 = vld [vmem:[#allocation2 + $0x38] sm:$0xf]
        %v418 = vld [vmem:[#allocation2 + $0x3c] sm:$0xf]
        %v419 = vld [vmem:[%s1] sm:$0xff]
        %v420 = vld [vmem:[%s1 + $0x8] sm:$0xff]
        %v421 = vld [vmem:[%s1 + $0x10] sm:$0xff]
        %v422 = vld [vmem:[%s1 + $0x18] sm:$0xff]
        %v423 = vld [vmem:[%s2] sm:$0xf]
        %v424 = vld [vmem:[%s2 + $0x4] sm:$0xf]
        %v425 = vld [vmem:[%s2 + $0x8] sm:$0xf]
        %v426 = vld [vmem:[%s2 + $0xc] sm:$0xf]
        %v427 = vld [vmem:[%s2 + $0x10] sm:$0xf]
        %v428 = vld [vmem:[%s2 + $0x14] sm:$0xf]
        %v429 = vld [vmem:[%s2 + $0x18] sm:$0xf]
        %v430 = vld [vmem:[%s2 + $0x1c] sm:$0xf]
        %v431 = vpack.c.bf16 %v420, %v419
        %v432 = vpack.c.bf16 %v422, %v421
        %v441 = vunpack.c.l.b16 %v423
        %v442 = vunpack.c.l.b16 %v424
        %v443 = vunpack.c.l.b16 %v425
        %v444 = vunpack.c.l.b16 %v426
        %v445 = vunpack.c.l.b16 %v427
        %v446 = vunpack.c.l.b16 %v428
        %v447 = vunpack.c.l.b16 %v429
        %v448 = vunpack.c.l.b16 %v430
        %v449 = vpack.c.b16 %v442, %v441
        %v450 = vpack.c.b16 %v444, %v443
        %v451 = vpack.c.b16 %v446, %v445
        %v452 = vpack.c.b16 %v448, %v447
        %vm457 = vcmask 523264
        %v459 = vsel %vm457, %v431, 0
        %v462 = vsel %vm457, %v432, 0
        %464 = vmatpush.bf16.msra.mxu0 0
        %465 = vmatpush.bf16.msra.mxu0 0
        %466 = vmatpush.bf16.msra.mxu0 0
        %467 = vmatpush.bf16.msra.mxu0 0
        %468 = vmatpush.bf16.msra.mxu0 %v452
        %469 = vmatpush.bf16.msra.mxu0 %v451
        %470 = vmatpush.bf16.msra.mxu0 %v450
        %471 = vmatpush.bf16.msra.mxu0 %v449
        %472 = vmatmul.bf16.gmra.mxu0 %v459
        %v473 = vpop.f32.mrf.mxu0
        %v474 = vadd.f32 0.0, %v473
        %v475 = vpop.f32.mrf.mxu0
        %v476 = vadd.f32 0.0, %v475
        %477 = vmatmul.bf16.gmra.mxu0 %v462
        %v478 = vpop.f32.mrf.mxu0
        %v479 = vadd.f32 0.0, %v478
        %v480 = vpop.f32.mrf.mxu0
        %v481 = vadd.f32 0.0, %v480
        %482 = vdwg.mxu0
        %v499 = vunpack.c.l.b16 %v403
        %v500 = vunpack.c.l.b16 %v404
        %v501 = vunpack.c.l.b16 %v405
        %v502 = vunpack.c.l.b16 %v406
        %v503 = vunpack.c.l.b16 %v407
        %v504 = vunpack.c.l.b16 %v408
        %v505 = vunpack.c.l.b16 %v409
        %v506 = vunpack.c.l.b16 %v410
        %v507 = vunpack.c.l.b16 %v411
        %v508 = vunpack.c.l.b16 %v412
        %v509 = vunpack.c.l.b16 %v413
        %v510 = vunpack.c.l.b16 %v414
        %v511 = vunpack.c.l.b16 %v415
        %v512 = vunpack.c.l.b16 %v416
        %v513 = vunpack.c.l.b16 %v417
        %v514 = vunpack.c.l.b16 %v418
        %v515 = vpack.c.b16 %v500, %v499
        %v516 = vpack.c.b16 %v502, %v501
        %v517 = vpack.c.b16 %v504, %v503
        %v518 = vpack.c.b16 %v506, %v505
        %v519 = vpack.c.b16 %v508, %v507
        %v520 = vpack.c.b16 %v510, %v509
        %v521 = vpack.c.b16 %v512, %v511
        %v522 = vpack.c.b16 %v514, %v513
        %531 = vmatpush.bf16.msra.mxu0 %v522
        %532 = vmatpush.bf16.msra.mxu0 %v521
        %533 = vmatpush.bf16.msra.mxu0 %v520
        %534 = vmatpush.bf16.msra.mxu0 %v519
        %535 = vmatpush.bf16.msra.mxu0 %v518
        %536 = vmatpush.bf16.msra.mxu0 %v517
        %537 = vmatpush.bf16.msra.mxu0 %v516
        %538 = vmatpush.bf16.msra.mxu0 %v515
        %539 = vmatmul.bf16.gmra.mxu0 %v401
        %v540 = vpop.f32.mrf.mxu0
        %v541 = vadd.f32 %v474, %v540
        %v542 = vpop.f32.mrf.mxu0
        %v543 = vadd.f32 %v476, %v542
        %544 = vmatmul.bf16.gmra.mxu0 %v402
        %v545 = vpop.f32.mrf.mxu0
        %v546 = vadd.f32 %v479, %v545
        %v547 = vpop.f32.mrf.mxu0
        %v548 = vadd.f32 %v481, %v547
        %549 = vdwg.mxu0
        %v550 = vmul.f32 %v541, %v541
        %v551 = vmul.f32 %v543, %v543
        %v552 = vmul.f32 %v546, %v546
        %v553 = vmul.f32 %v548, %v548
        %554 = vadd.xlane.f32.xlu0 %v550
        %v555 = vpop.xlane.xlu0 %554
        %556 = vadd.xlane.f32.xlu0 %v551
        %v557 = vpop.xlane.xlu0 %556
        %558 = vadd.xlane.f32.xlu0 %v552
        %v559 = vpop.xlane.xlu0 %558
        %560 = vadd.xlane.f32.xlu0 %v553
        %v561 = vpop.xlane.xlu0 %560
        %v562 = vrcp.pop 128.0
        %v563 = vmul.f32 128.0, %v562
        %v564 = vsub.f32 1.0, %v563
        %v565 = vmul.f32 %v562, %v564
        %v566 = vadd.f32 %v562, %v565
        %vm567 = vweird.f32 %v562
        %v568 = vsel %vm567, %v562, %v566
        %v569 = vmul.f32 %v555, %v568
        %v570 = vmul.f32 %v557, %v568
        %v571 = vmul.f32 %v559, %v568
        %v572 = vmul.f32 %v561, %v568
        %v573 = vadd.f32 %v569, 1e-06
        %v574 = vadd.f32 %v570, 1e-06
        %v575 = vadd.f32 %v571, 1e-06
        %v576 = vadd.f32 %v572, 1e-06
        %v577 = vrsqrt.pop %v573
        %v578 = vmul.f32 %v577, %v573
        %v579 = vmul.f32 %v578, %v577
        %v580 = vmul.f32 0.5, %v579
        %v581 = vsub.f32 1.5, %v580
        %v582 = vmul.f32 %v577, %v581
        %vm583 = vweird.f32 %v573
        %vm584 = vweird.f32 %v577
        %vm585 = vmor %vm583, %vm584
        %v586 = vsel %vm585, %v577, %v582
        %v587 = vrsqrt.pop %v574
        %v588 = vmul.f32 %v587, %v574
        %v589 = vmul.f32 %v588, %v587
        %v590 = vmul.f32 0.5, %v589
        %v591 = vsub.f32 1.5, %v590
        %v592 = vmul.f32 %v587, %v591
        %vm593 = vweird.f32 %v574
        %vm594 = vweird.f32 %v587
        %vm595 = vmor %vm593, %vm594
        %v596 = vsel %vm595, %v587, %v592
        %v597 = vrsqrt.pop %v575
        %v598 = vmul.f32 %v597, %v575
        %v599 = vmul.f32 %v598, %v597
        %v600 = vmul.f32 0.5, %v599
        %v601 = vsub.f32 1.5, %v600
        %v602 = vmul.f32 %v597, %v601
        %vm603 = vweird.f32 %v575
        %vm604 = vweird.f32 %v597
        %vm605 = vmor %vm603, %vm604
        %v606 = vsel %vm605, %v597, %v602
        %v607 = vrsqrt.pop %v576
        %v608 = vmul.f32 %v607, %v576
        %v609 = vmul.f32 %v608, %v607
        %v610 = vmul.f32 0.5, %v609
        %v611 = vsub.f32 1.5, %v610
        %v612 = vmul.f32 %v607, %v611
        %vm613 = vweird.f32 %v576
        %vm614 = vweird.f32 %v607
        %vm615 = vmor %vm613, %vm614
        %v616 = vsel %vm615, %v607, %v612
        %v617 = vmul.f32 %v541, %v586
        %v618 = vmul.f32 %v543, %v596
        %v619 = vmul.f32 %v546, %v606
        %v620 = vmul.f32 %v548, %v616
        %v621 = vperm.slane %v370, 0
        %v622 = vmul.f32 %v617, %v621
        %v623 = vmul.f32 %v618, %v621
        %v624 = vmul.f32 %v619, %v621
        %v625 = vmul.f32 %v620, %v621
        %v626 = vld [vmem:[#allocation4] sm:$0xff]
        %v627 = vld [vmem:[#allocation4 + $0x8] sm:$0xf]
        %v628 = vld [vmem:[#allocation4 + $0xc] sm:$0xff]
        %v629 = vld [vmem:[#allocation4 + $0x14] sm:$0xf]
        %v630 = vld [vmem:[#allocation4 + $0x18] sm:$0xff]
        %v631 = vld [vmem:[#allocation4 + $0x20] sm:$0xf]
        %v632 = vld [vmem:[#allocation4 + $0x24] sm:$0xff]
        %v633 = vld [vmem:[#allocation4 + $0x2c] sm:$0xf]
        %v634 = vld [vmem:[#allocation4 + $0x30] sm:$0xff]
        %v635 = vld [vmem:[#allocation4 + $0x38] sm:$0xf]
        %v636 = vld [vmem:[#allocation4 + $0x3c] sm:$0xff]
        %v637 = vld [vmem:[#allocation4 + $0x44] sm:$0xf]
        %v638 = vld [vmem:[#allocation4 + $0x48] sm:$0xff]
        %v639 = vld [vmem:[#allocation4 + $0x50] sm:$0xf]
        %v640 = vld [vmem:[#allocation4 + $0x54] sm:$0xff]
        %v641 = vld [vmem:[#allocation4 + $0x5c] sm:$0xf]
        %v642 = vld [vmem:[#allocation4 + $0x60] sm:$0xff]
        %v643 = vld [vmem:[#allocation4 + $0x68] sm:$0xf]
        %v644 = vld [vmem:[#allocation4 + $0x6c] sm:$0xff]
        %v645 = vld [vmem:[#allocation4 + $0x74] sm:$0xf]
        %v646 = vld [vmem:[#allocation4 + $0x78] sm:$0xff]
        %v647 = vld [vmem:[#allocation4 + $0x80] sm:$0xf]
        %v648 = vld [vmem:[#allocation4 + $0x84] sm:$0xff]
        %v649 = vld [vmem:[#allocation4 + $0x8c] sm:$0xf]
        %v650 = vld [vmem:[#allocation4 + $0x90] sm:$0xff]
        %v651 = vld [vmem:[#allocation4 + $0x98] sm:$0xf]
        %v652 = vld [vmem:[#allocation4 + $0x9c] sm:$0xff]
        %v653 = vld [vmem:[#allocation4 + $0xa4] sm:$0xf]
        %v654 = vld [vmem:[#allocation4 + $0xa8] sm:$0xff]
        %v655 = vld [vmem:[#allocation4 + $0xb0] sm:$0xf]
        %v656 = vld [vmem:[#allocation4 + $0xb4] sm:$0xff]
        %v657 = vld [vmem:[#allocation4 + $0xbc] sm:$0xf]
        %v658 = vpack.c.bf16 %v623, %v622
        %v659 = vpack.c.bf16 %v625, %v624
        %v692 = vunpack.c.l.b16 %v626
        %v693 = vunpack.c.h.b16 %v626
        %v694 = vunpack.c.l.b16 %v627
        %v695 = vunpack.c.l.b16 %v628
        %v696 = vunpack.c.h.b16 %v628
        %v697 = vunpack.c.l.b16 %v629
        %v698 = vunpack.c.l.b16 %v630
        %v699 = vunpack.c.h.b16 %v630
        %v700 = vunpack.c.l.b16 %v631
        %v701 = vunpack.c.l.b16 %v632
        %v702 = vunpack.c.h.b16 %v632
        %v703 = vunpack.c.l.b16 %v633
        %v704 = vunpack.c.l.b16 %v634
        %v705 = vunpack.c.h.b16 %v634
        %v706 = vunpack.c.l.b16 %v635
        %v707 = vunpack.c.l.b16 %v636
        %v708 = vunpack.c.h.b16 %v636
        %v709 = vunpack.c.l.b16 %v637
        %v710 = vunpack.c.l.b16 %v638
        %v711 = vunpack.c.h.b16 %v638
        %v712 = vunpack.c.l.b16 %v639
        %v713 = vunpack.c.l.b16 %v640
        %v714 = vunpack.c.h.b16 %v640
        %v715 = vunpack.c.l.b16 %v641
        %v716 = vunpack.c.l.b16 %v642
        %v717 = vunpack.c.h.b16 %v642
        %v718 = vunpack.c.l.b16 %v643
        %v719 = vunpack.c.l.b16 %v644
        %v720 = vunpack.c.h.b16 %v644
        %v721 = vunpack.c.l.b16 %v645
        %v722 = vunpack.c.l.b16 %v646
        %v723 = vunpack.c.h.b16 %v646
        %v724 = vunpack.c.l.b16 %v647
        %v725 = vunpack.c.l.b16 %v648
        %v726 = vunpack.c.h.b16 %v648
        %v727 = vunpack.c.l.b16 %v649
        %v728 = vunpack.c.l.b16 %v650
        %v729 = vunpack.c.h.b16 %v650
        %v730 = vunpack.c.l.b16 %v651
        %v731 = vunpack.c.l.b16 %v652
        %v732 = vunpack.c.h.b16 %v652
        %v733 = vunpack.c.l.b16 %v653
        %v734 = vunpack.c.l.b16 %v654
        %v735 = vunpack.c.h.b16 %v654
        %v736 = vunpack.c.l.b16 %v655
        %v737 = vunpack.c.l.b16 %v656
        %v738 = vunpack.c.h.b16 %v656
        %v739 = vunpack.c.l.b16 %v657
        %v740 = vpack.c.b16 %v695, %v692
        %v741 = vpack.c.b16 %v696, %v693
        %v742 = vpack.c.b16 %v697, %v694
        %v743 = vpack.c.b16 %v701, %v698
        %v744 = vpack.c.b16 %v702, %v699
        %v745 = vpack.c.b16 %v703, %v700
        %v746 = vpack.c.b16 %v707, %v704
        %v747 = vpack.c.b16 %v708, %v705
        %v748 = vpack.c.b16 %v709, %v706
        %v749 = vpack.c.b16 %v713, %v710
        %v750 = vpack.c.b16 %v714, %v711
        %v751 = vpack.c.b16 %v715, %v712
        %v752 = vpack.c.b16 %v719, %v716
        %v753 = vpack.c.b16 %v720, %v717
        %v754 = vpack.c.b16 %v721, %v718
        %v755 = vpack.c.b16 %v725, %v722
        %v756 = vpack.c.b16 %v726, %v723
        %v757 = vpack.c.b16 %v727, %v724
        %v758 = vpack.c.b16 %v731, %v728
        %v759 = vpack.c.b16 %v732, %v729
        %v760 = vpack.c.b16 %v733, %v730
        %v761 = vpack.c.b16 %v737, %v734
        %v762 = vpack.c.b16 %v738, %v735
        %v763 = vpack.c.b16 %v739, %v736
        %788 = vmatpush.bf16.msra.mxu0 %v761
        %789 = vmatpush.bf16.msra.mxu0 %v758
        %790 = vmatpush.bf16.msra.mxu0 %v755
        %791 = vmatpush.bf16.msra.mxu0 %v752
        %792 = vmatpush.bf16.msra.mxu0 %v749
        %793 = vmatpush.bf16.msra.mxu0 %v746
        %794 = vmatpush.bf16.msra.mxu0 %v743
        %795 = vmatpush.bf16.msra.mxu0 %v740
        %796 = vmatmul.bf16.gmra.mxu0 %v658
        %v797 = vpop.f32.mrf.mxu0
        %v798 = vadd.f32 0.0, %v797
        %v799 = vpop.f32.mrf.mxu0
        %v800 = vadd.f32 0.0, %v799
        %801 = vmatmul.bf16.gmra.mxu0 %v659
        %v802 = vpop.f32.mrf.mxu0
        %v803 = vadd.f32 0.0, %v802
        %v804 = vpop.f32.mrf.mxu0
        %v805 = vadd.f32 0.0, %v804
        %806 = vdwg.mxu0
        %807 = vmatpush.bf16.msra.mxu0 %v762
        %808 = vmatpush.bf16.msra.mxu0 %v759
        %809 = vmatpush.bf16.msra.mxu0 %v756
        %810 = vmatpush.bf16.msra.mxu0 %v753
        %811 = vmatpush.bf16.msra.mxu0 %v750
        %812 = vmatpush.bf16.msra.mxu0 %v747
        %813 = vmatpush.bf16.msra.mxu0 %v744
        %814 = vmatpush.bf16.msra.mxu0 %v741
        %815 = vmatmul.bf16.gmra.mxu0 %v658
        %v816 = vpop.f32.mrf.mxu0
        %v817 = vadd.f32 0.0, %v816
        %v818 = vpop.f32.mrf.mxu0
        %v819 = vadd.f32 0.0, %v818
        %820 = vmatmul.bf16.gmra.mxu0 %v659
        %v821 = vpop.f32.mrf.mxu0
        %v822 = vadd.f32 0.0, %v821
        %v823 = vpop.f32.mrf.mxu0
        %v824 = vadd.f32 0.0, %v823
        %825 = vdwg.mxu0
        %826 = vmatpush.bf16.msra.mxu0 %v763
        %827 = vmatpush.bf16.msra.mxu0 %v760
        %828 = vmatpush.bf16.msra.mxu0 %v757
        %829 = vmatpush.bf16.msra.mxu0 %v754
        %830 = vmatpush.bf16.msra.mxu0 %v751
        %831 = vmatpush.bf16.msra.mxu0 %v748
        %832 = vmatpush.bf16.msra.mxu0 %v745
        %833 = vmatpush.bf16.msra.mxu0 %v742
        %834 = vmatmul.bf16.gmra.mxu0 %v658
        %v835 = vpop.f32.mrf.mxu0
        %v836 = vadd.f32 0.0, %v835
        %v837 = vpop.f32.mrf.mxu0
        %v838 = vadd.f32 0.0, %v837
        %839 = vmatmul.bf16.gmra.mxu0 %v659
        %v840 = vpop.f32.mrf.mxu0
        %v841 = vadd.f32 0.0, %v840
        %v842 = vpop.f32.mrf.mxu0
        %v843 = vadd.f32 0.0, %v842
        %844 = vdwg.mxu0
        %v845 = vpack.c.bf16 %v800, %v798
        %v846 = vpack.c.bf16 %v805, %v803
        %v847 = vpack.c.bf16 %v819, %v817
        %v848 = vpack.c.bf16 %v824, %v822
        %849 = vmatpush.bf16.xpose.msra.mxu0 0
        %850 = vmatpush.bf16.xpose.msra.mxu0 0
        %851 = vmatpush.bf16.xpose.msra.mxu0 0
        %852 = vmatpush.bf16.xpose.msra.mxu0 0
        %853 = vmatpush.bf16.xpose.msra.mxu0 0
        %854 = vmatpush.bf16.xpose.msra.mxu0 0
        %855 = vmatpush.bf16.xpose.msra.mxu0 %v848
        %856 = vmatpush.bf16.xpose.msra.mxu0 %v847
        %857 = vmatmul.bf16.gmra.mxu0 %v845
        %v858 = vpop.f32.mrf.mxu0
        %v859 = vadd.f32 0.0, %v858
        %v860 = vpop.f32.mrf.mxu0
        %v861 = vadd.f32 0.0, %v860
        %862 = vmatmul.bf16.gmra.mxu0 %v846
        %v863 = vpop.f32.mrf.mxu0
        %v864 = vadd.f32 0.0, %v863
        %v865 = vpop.f32.mrf.mxu0
        %v866 = vadd.f32 0.0, %v865
        %867 = vdwg.mxu0
        %v868 = vlaneseq
        %v869 = vshrl.u32 %v868, 7
        %v870 = vadd.s32 %v869, 8
        %v871 = vadd.s32 %v869, 16
        %v872 = vadd.s32 %v869, 24
        %vm873 = vcmp.ge.s32.totalorder %v869, %v376
        %vm874 = vcmp.ge.s32.totalorder %v870, %v376
        %vm875 = vcmp.ge.s32.totalorder %v871, %v376
        %vm876 = vcmp.ge.s32.totalorder %v872, %v376
        %v877 = vsel %vm873, %v859, -1e+30
        %v878 = vsel %vm874, %v861, -1e+30
        %v879 = vsel %vm875, %v864, -1e+30
        %v880 = vsel %vm876, %v866, -1e+30
        %vm881 = vcmask 261120
        %v882 = vsel %vm881, %v877, -inf
        %883 = vmax.xlane.f32.xlu0 %v882
        %v884 = vpop.xlane.xlu0 %883
        %v885 = vsel %vm881, %v878, -inf
        %886 = vmax.xlane.f32.xlu0 %v885
        %v887 = vpop.xlane.xlu0 %886
        %v888 = vsel %vm881, %v879, -inf
        %889 = vmax.xlane.f32.xlu0 %v888
        %v890 = vpop.xlane.xlu0 %889
        %v891 = vsel %vm881, %v880, -inf
        %892 = vmax.xlane.f32.xlu0 %v891
        %v893 = vpop.xlane.xlu0 %892
        %v894 = vsub.f32 %v877, %v884
        %v895 = vsub.f32 %v878, %v887
        %v896 = vsub.f32 %v879, %v890
        %v897 = vsub.f32 %v880, %v893
        %v898 = vmul.f32 %v894, 1.442695
        %v899 = vpow.pop %v898
        %v900 = vmul.f32 %v895, 1.442695
        %v901 = vpow.pop %v900
        %v902 = vmul.f32 %v896, 1.442695
        %v903 = vpow.pop %v902
        %v904 = vmul.f32 %v897, 1.442695
        %v905 = vpow.pop %v904
        %v906 = vsel %vm881, %v899, 0.0
        %907 = vadd.xlane.f32.xlu0 %v906
        %v908 = vpop.xlane.xlu0 %907
        %v909 = vsel %vm881, %v901, 0.0
        %910 = vadd.xlane.f32.xlu0 %v909
        %v911 = vpop.xlane.xlu0 %910
        %v912 = vsel %vm881, %v903, 0.0
        %913 = vadd.xlane.f32.xlu0 %v912
        %v914 = vpop.xlane.xlu0 %913
        %v915 = vsel %vm881, %v905, 0.0
        %916 = vadd.xlane.f32.xlu0 %v915
        %v917 = vpop.xlane.xlu0 %916
        %v918 = vrcp.pop %v908
        %v919 = vrcp.pop %v911
        %v920 = vrcp.pop %v914
        %v921 = vrcp.pop %v917
        %v922 = vmul.f32 %v899, %v918
        %v923 = vmul.f32 %v901, %v919
        %v924 = vmul.f32 %v903, %v920
        %v925 = vmul.f32 %v905, %v921
        %v926 = vpack.c.bf16 %v923, %v922
        %v927 = vpack.c.bf16 %v925, %v924
        %v928 = vpack.c.bf16 %v838, %v836
        %v929 = vpack.c.bf16 %v843, %v841
        %v931 = vsel %vm881, %v926, 0
        %v934 = vsel %vm881, %v927, 0
        %936 = vmatpush.bf16.msra.mxu0 0
        %937 = vmatpush.bf16.msra.mxu0 0
        %938 = vmatpush.bf16.msra.mxu0 0
        %939 = vmatpush.bf16.msra.mxu0 0
        %940 = vmatpush.bf16.msra.mxu0 0
        %941 = vmatpush.bf16.msra.mxu0 0
        %942 = vmatpush.bf16.msra.mxu0 %v929
        %943 = vmatpush.bf16.msra.mxu0 %v928
        %944 = vmatmul.bf16.gmra.mxu0 %v931
        %v945 = vpop.f32.mrf.mxu0
        %v946 = vadd.f32 0.0, %v945
        %v947 = vpop.f32.mrf.mxu0
        %v948 = vadd.f32 0.0, %v947
        %949 = vmatmul.bf16.gmra.mxu0 %v934
        %v950 = vpop.f32.mrf.mxu0
        %v951 = vadd.f32 0.0, %v950
        %v952 = vpop.f32.mrf.mxu0
        %v953 = vadd.f32 0.0, %v952
        %954 = vdwg.mxu0
        %s955 = scalar_lea.vmem [#allocation2], 64
        %v956 = vld [vmem:[%s955] sm:$0xf]
        %v957 = vld [vmem:[%s955 + $0x4] sm:$0xf]
        %v958 = vld [vmem:[%s955 + $0x8] sm:$0xf]
        %v959 = vld [vmem:[%s955 + $0xc] sm:$0xf]
        %v960 = vld [vmem:[%s955 + $0x10] sm:$0xf]
        %v961 = vld [vmem:[%s955 + $0x14] sm:$0xf]
        %v962 = vld [vmem:[%s955 + $0x18] sm:$0xf]
        %v963 = vld [vmem:[%s955 + $0x1c] sm:$0xf]
        %v964 = vld [vmem:[%s955 + $0x20] sm:$0xf]
        %v965 = vld [vmem:[%s955 + $0x24] sm:$0xf]
        %v966 = vld [vmem:[%s955 + $0x28] sm:$0xf]
        %v967 = vld [vmem:[%s955 + $0x2c] sm:$0xf]
        %v968 = vld [vmem:[%s955 + $0x30] sm:$0xf]
        %v969 = vld [vmem:[%s955 + $0x34] sm:$0xf]
        %v970 = vld [vmem:[%s955 + $0x38] sm:$0xf]
        %v971 = vld [vmem:[%s955 + $0x3c] sm:$0xf]
        %v972 = vpack.c.bf16 %v948, %v946
        %v973 = vpack.c.bf16 %v953, %v951
        %v990 = vunpack.c.l.b16 %v956
        %v991 = vunpack.c.l.b16 %v957
        %v992 = vunpack.c.l.b16 %v958
        %v993 = vunpack.c.l.b16 %v959
        %v994 = vunpack.c.l.b16 %v960
        %v995 = vunpack.c.l.b16 %v961
        %v996 = vunpack.c.l.b16 %v962
        %v997 = vunpack.c.l.b16 %v963
        %v998 = vunpack.c.l.b16 %v964
        %v999 = vunpack.c.l.b16 %v965
        %v1000 = vunpack.c.l.b16 %v966
        %v1001 = vunpack.c.l.b16 %v967
        %v1002 = vunpack.c.l.b16 %v968
        %v1003 = vunpack.c.l.b16 %v969
        %v1004 = vunpack.c.l.b16 %v970
        %v1005 = vunpack.c.l.b16 %v971
        %v1006 = vpack.c.b16 %v991, %v990
        %v1007 = vpack.c.b16 %v993, %v992
        %v1008 = vpack.c.b16 %v995, %v994
        %v1009 = vpack.c.b16 %v997, %v996
        %v1010 = vpack.c.b16 %v999, %v998
        %v1011 = vpack.c.b16 %v1001, %v1000
        %v1012 = vpack.c.b16 %v1003, %v1002
        %v1013 = vpack.c.b16 %v1005, %v1004
        %1022 = vmatpush.bf16.msra.mxu0 %v1013
        %1023 = vmatpush.bf16.msra.mxu0 %v1012
        %1024 = vmatpush.bf16.msra.mxu0 %v1011
        %1025 = vmatpush.bf16.msra.mxu0 %v1010
        %1026 = vmatpush.bf16.msra.mxu0 %v1009
        %1027 = vmatpush.bf16.msra.mxu0 %v1008
        %1028 = vmatpush.bf16.msra.mxu0 %v1007
        %1029 = vmatpush.bf16.msra.mxu0 %v1006
        %1030 = vmatmul.bf16.gmra.mxu0 %v972
        %v1031 = vpop.f32.mrf.mxu0
        %v1032 = vadd.f32 0.0, %v1031
        %v1033 = vpop.f32.mrf.mxu0
        %v1034 = vadd.f32 0.0, %v1033
        %1035 = vmatmul.bf16.gmra.mxu0 %v973
        %v1036 = vpop.f32.mrf.mxu0
        %v1037 = vadd.f32 0.0, %v1036
        %v1038 = vpop.f32.mrf.mxu0
        %v1039 = vadd.f32 0.0, %v1038
        %1040 = vdwg.mxu0
        %v1041 = vadd.f32 %v541, %v1032
        %v1042 = vadd.f32 %v543, %v1034
        %v1043 = vadd.f32 %v546, %v1037
        %v1044 = vadd.f32 %v548, %v1039
        %v1045 = vmul.f32 %v1041, %v1041
        %v1046 = vmul.f32 %v1042, %v1042
        %v1047 = vmul.f32 %v1043, %v1043
        %v1048 = vmul.f32 %v1044, %v1044
        %1049 = vadd.xlane.f32.xlu0 %v1045
        %v1050 = vpop.xlane.xlu0 %1049
        %1051 = vadd.xlane.f32.xlu0 %v1046
        %v1052 = vpop.xlane.xlu0 %1051
        %1053 = vadd.xlane.f32.xlu0 %v1047
        %v1054 = vpop.xlane.xlu0 %1053
        %1055 = vadd.xlane.f32.xlu0 %v1048
        %v1056 = vpop.xlane.xlu0 %1055
        %v1057 = vmul.f32 %v1050, %v568
        %v1058 = vmul.f32 %v1052, %v568
        %v1059 = vmul.f32 %v1054, %v568
        %v1060 = vmul.f32 %v1056, %v568
        %v1061 = vadd.f32 %v1057, 1e-06
        %v1062 = vadd.f32 %v1058, 1e-06
        %v1063 = vadd.f32 %v1059, 1e-06
        %v1064 = vadd.f32 %v1060, 1e-06
        %v1065 = vrsqrt.pop %v1061
        %v1066 = vmul.f32 %v1065, %v1061
        %v1067 = vmul.f32 %v1066, %v1065
        %v1068 = vmul.f32 0.5, %v1067
        %v1069 = vsub.f32 1.5, %v1068
        %v1070 = vmul.f32 %v1065, %v1069
        %vm1071 = vweird.f32 %v1061
        %vm1072 = vweird.f32 %v1065
        %vm1073 = vmor %vm1071, %vm1072
        %v1074 = vsel %vm1073, %v1065, %v1070
        %v1075 = vrsqrt.pop %v1062
        %v1076 = vmul.f32 %v1075, %v1062
        %v1077 = vmul.f32 %v1076, %v1075
        %v1078 = vmul.f32 0.5, %v1077
        %v1079 = vsub.f32 1.5, %v1078
        %v1080 = vmul.f32 %v1075, %v1079
        %vm1081 = vweird.f32 %v1062
        %vm1082 = vweird.f32 %v1075
        %vm1083 = vmor %vm1081, %vm1082
        %v1084 = vsel %vm1083, %v1075, %v1080
        %v1085 = vrsqrt.pop %v1063
        %v1086 = vmul.f32 %v1085, %v1063
        %v1087 = vmul.f32 %v1086, %v1085
        %v1088 = vmul.f32 0.5, %v1087
        %v1089 = vsub.f32 1.5, %v1088
        %v1090 = vmul.f32 %v1085, %v1089
        %vm1091 = vweird.f32 %v1063
        %vm1092 = vweird.f32 %v1085
        %vm1093 = vmor %vm1091, %vm1092
        %v1094 = vsel %vm1093, %v1085, %v1090
        %v1095 = vrsqrt.pop %v1064
        %v1096 = vmul.f32 %v1095, %v1064
        %v1097 = vmul.f32 %v1096, %v1095
        %v1098 = vmul.f32 0.5, %v1097
        %v1099 = vsub.f32 1.5, %v1098
        %v1100 = vmul.f32 %v1095, %v1099
        %vm1101 = vweird.f32 %v1064
        %vm1102 = vweird.f32 %v1095
        %vm1103 = vmor %vm1101, %vm1102
        %v1104 = vsel %vm1103, %v1095, %v1100
        %v1105 = vmul.f32 %v1041, %v1074
        %v1106 = vmul.f32 %v1042, %v1084
        %v1107 = vmul.f32 %v1043, %v1094
        %v1108 = vmul.f32 %v1044, %v1104
        %v1109 = vperm.slane %v370, 1
        %v1110 = vmul.f32 %v1105, %v1109
        %v1111 = vmul.f32 %v1106, %v1109
        %v1112 = vmul.f32 %v1107, %v1109
        %v1113 = vmul.f32 %v1108, %v1109
        %v1114 = vld [vmem:[#allocation6] sm:$0xff]
        %v1115 = vld [vmem:[#allocation6 + $0x8] sm:$0xff]
        %v1116 = vld [vmem:[#allocation6 + $0x10] sm:$0xff]
        %v1117 = vld [vmem:[#allocation6 + $0x18] sm:$0xff]
        %v1118 = vld [vmem:[#allocation6 + $0x20] sm:$0xff]
        %v1119 = vld [vmem:[#allocation6 + $0x28] sm:$0xff]
        %v1120 = vld [vmem:[#allocation6 + $0x30] sm:$0xff]
        %v1121 = vld [vmem:[#allocation6 + $0x38] sm:$0xff]
        %v1122 = vld [vmem:[#allocation6 + $0x40] sm:$0xff]
        %v1123 = vld [vmem:[#allocation6 + $0x48] sm:$0xff]
        %v1124 = vld [vmem:[#allocation6 + $0x50] sm:$0xff]
        %v1125 = vld [vmem:[#allocation6 + $0x58] sm:$0xff]
        %v1126 = vld [vmem:[#allocation6 + $0x60] sm:$0xff]
        %v1127 = vld [vmem:[#allocation6 + $0x68] sm:$0xff]
        %v1128 = vld [vmem:[#allocation6 + $0x70] sm:$0xff]
        %v1129 = vld [vmem:[#allocation6 + $0x78] sm:$0xff]
        %v1130 = vld [vmem:[#allocation6 + $0x80] sm:$0xff]
        %v1131 = vld [vmem:[#allocation6 + $0x88] sm:$0xff]
        %v1132 = vld [vmem:[#allocation6 + $0x90] sm:$0xff]
        %v1133 = vld [vmem:[#allocation6 + $0x98] sm:$0xff]
        %v1134 = vld [vmem:[#allocation6 + $0xa0] sm:$0xff]
        %v1135 = vld [vmem:[#allocation6 + $0xa8] sm:$0xff]
        %v1136 = vld [vmem:[#allocation6 + $0xb0] sm:$0xff]
        %v1137 = vld [vmem:[#allocation6 + $0xb8] sm:$0xff]
        %v1138 = vld [vmem:[#allocation6 + $0xc0] sm:$0xff]
        %v1139 = vld [vmem:[#allocation6 + $0xc8] sm:$0xff]
        %v1140 = vld [vmem:[#allocation6 + $0xd0] sm:$0xff]
        %v1141 = vld [vmem:[#allocation6 + $0xd8] sm:$0xff]
        %v1142 = vld [vmem:[#allocation6 + $0xe0] sm:$0xff]
        %v1143 = vld [vmem:[#allocation6 + $0xe8] sm:$0xff]
        %v1144 = vld [vmem:[#allocation6 + $0xf0] sm:$0xff]
        %v1145 = vld [vmem:[#allocation6 + $0xf8] sm:$0xff]
        %v1146 = vpack.c.bf16 %v1111, %v1110
        %v1147 = vpack.c.bf16 %v1113, %v1112
        %v1180 = vunpack.c.l.b16 %v1114
        %v1181 = vunpack.c.h.b16 %v1114
        %v1182 = vunpack.c.l.b16 %v1115
        %v1183 = vunpack.c.h.b16 %v1115
        %v1184 = vunpack.c.l.b16 %v1116
        %v1185 = vunpack.c.h.b16 %v1116
        %v1186 = vunpack.c.l.b16 %v1117
        %v1187 = vunpack.c.h.b16 %v1117
        %v1188 = vunpack.c.l.b16 %v1118
        %v1189 = vunpack.c.h.b16 %v1118
        %v1190 = vunpack.c.l.b16 %v1119
        %v1191 = vunpack.c.h.b16 %v1119
        %v1192 = vunpack.c.l.b16 %v1120
        %v1193 = vunpack.c.h.b16 %v1120
        %v1194 = vunpack.c.l.b16 %v1121
        %v1195 = vunpack.c.h.b16 %v1121
        %v1196 = vunpack.c.l.b16 %v1122
        %v1197 = vunpack.c.h.b16 %v1122
        %v1198 = vunpack.c.l.b16 %v1123
        %v1199 = vunpack.c.h.b16 %v1123
        %v1200 = vunpack.c.l.b16 %v1124
        %v1201 = vunpack.c.h.b16 %v1124
        %v1202 = vunpack.c.l.b16 %v1125
        %v1203 = vunpack.c.h.b16 %v1125
        %v1204 = vunpack.c.l.b16 %v1126
        %v1205 = vunpack.c.h.b16 %v1126
        %v1206 = vunpack.c.l.b16 %v1127
        %v1207 = vunpack.c.h.b16 %v1127
        %v1208 = vunpack.c.l.b16 %v1128
        %v1209 = vunpack.c.h.b16 %v1128
        %v1210 = vunpack.c.l.b16 %v1129
        %v1211 = vunpack.c.h.b16 %v1129
        %v1212 = vunpack.c.l.b16 %v1130
        %v1213 = vunpack.c.h.b16 %v1130
        %v1214 = vunpack.c.l.b16 %v1131
        %v1215 = vunpack.c.h.b16 %v1131
        %v1216 = vunpack.c.l.b16 %v1132
        %v1217 = vunpack.c.h.b16 %v1132
        %v1218 = vunpack.c.l.b16 %v1133
        %v1219 = vunpack.c.h.b16 %v1133
        %v1220 = vunpack.c.l.b16 %v1134
        %v1221 = vunpack.c.h.b16 %v1134
        %v1222 = vunpack.c.l.b16 %v1135
        %v1223 = vunpack.c.h.b16 %v1135
        %v1224 = vunpack.c.l.b16 %v1136
        %v1225 = vunpack.c.h.b16 %v1136
        %v1226 = vunpack.c.l.b16 %v1137
        %v1227 = vunpack.c.h.b16 %v1137
        %v1228 = vunpack.c.l.b16 %v1138
        %v1229 = vunpack.c.h.b16 %v1138
        %v1230 = vunpack.c.l.b16 %v1139
        %v1231 = vunpack.c.h.b16 %v1139
        %v1232 = vunpack.c.l.b16 %v1140
        %v1233 = vunpack.c.h.b16 %v1140
        %v1234 = vunpack.c.l.b16 %v1141
        %v1235 = vunpack.c.h.b16 %v1141
        %v1236 = vunpack.c.l.b16 %v1142
        %v1237 = vunpack.c.h.b16 %v1142
        %v1238 = vunpack.c.l.b16 %v1143
        %v1239 = vunpack.c.h.b16 %v1143
        %v1240 = vunpack.c.l.b16 %v1144
        %v1241 = vunpack.c.h.b16 %v1144
        %v1242 = vunpack.c.l.b16 %v1145
        %v1243 = vunpack.c.h.b16 %v1145
        %v1244 = vpack.c.b16 %v1184, %v1180
        %v1245 = vpack.c.b16 %v1185, %v1181
        %v1246 = vpack.c.b16 %v1186, %v1182
        %v1247 = vpack.c.b16 %v1187, %v1183
        %v1248 = vpack.c.b16 %v1192, %v1188
        %v1249 = vpack.c.b16 %v1193, %v1189
        %v1250 = vpack.c.b16 %v1194, %v1190
        %v1251 = vpack.c.b16 %v1195, %v1191
        %v1252 = vpack.c.b16 %v1200, %v1196
        %v1253 = vpack.c.b16 %v1201, %v1197
        %v1254 = vpack.c.b16 %v1202, %v1198
        %v1255 = vpack.c.b16 %v1203, %v1199
        %v1256 = vpack.c.b16 %v1208, %v1204
        %v1257 = vpack.c.b16 %v1209, %v1205
        %v1258 = vpack.c.b16 %v1210, %v1206
        %v1259 = vpack.c.b16 %v1211, %v1207
        %v1260 = vpack.c.b16 %v1216, %v1212
        %v1261 = vpack.c.b16 %v1217, %v1213
        %v1262 = vpack.c.b16 %v1218, %v1214
        %v1263 = vpack.c.b16 %v1219, %v1215
        %v1264 = vpack.c.b16 %v1224, %v1220
        %v1265 = vpack.c.b16 %v1225, %v1221
        %v1266 = vpack.c.b16 %v1226, %v1222
        %v1267 = vpack.c.b16 %v1227, %v1223
        %v1268 = vpack.c.b16 %v1232, %v1228
        %v1269 = vpack.c.b16 %v1233, %v1229
        %v1270 = vpack.c.b16 %v1234, %v1230
        %v1271 = vpack.c.b16 %v1235, %v1231
        %v1272 = vpack.c.b16 %v1240, %v1236
        %v1273 = vpack.c.b16 %v1241, %v1237
        %v1274 = vpack.c.b16 %v1242, %v1238
        %v1275 = vpack.c.b16 %v1243, %v1239
        %1308 = vmatpush.bf16.msra.mxu0 %v1272
        %1309 = vmatpush.bf16.msra.mxu0 %v1268
        %1310 = vmatpush.bf16.msra.mxu0 %v1264
        %1311 = vmatpush.bf16.msra.mxu0 %v1260
        %1312 = vmatpush.bf16.msra.mxu0 %v1256
        %1313 = vmatpush.bf16.msra.mxu0 %v1252
        %1314 = vmatpush.bf16.msra.mxu0 %v1248
        %1315 = vmatpush.bf16.msra.mxu0 %v1244
        %1316 = vmatmul.bf16.gmra.mxu0 %v1146
        %v1317 = vpop.f32.mrf.mxu0
        %v1318 = vadd.f32 0.0, %v1317
        %v1319 = vpop.f32.mrf.mxu0
        %v1320 = vadd.f32 0.0, %v1319
        %1321 = vmatmul.bf16.gmra.mxu0 %v1147
        %v1322 = vpop.f32.mrf.mxu0
        %v1323 = vadd.f32 0.0, %v1322
        %v1324 = vpop.f32.mrf.mxu0
        %v1325 = vadd.f32 0.0, %v1324
        %1326 = vdwg.mxu0
        %1327 = vmatpush.bf16.msra.mxu0 %v1273
        %1328 = vmatpush.bf16.msra.mxu0 %v1269
        %1329 = vmatpush.bf16.msra.mxu0 %v1265
        %1330 = vmatpush.bf16.msra.mxu0 %v1261
        %1331 = vmatpush.bf16.msra.mxu0 %v1257
        %1332 = vmatpush.bf16.msra.mxu0 %v1253
        %1333 = vmatpush.bf16.msra.mxu0 %v1249
        %1334 = vmatpush.bf16.msra.mxu0 %v1245
        %1335 = vmatmul.bf16.gmra.mxu0 %v1146
        %v1336 = vpop.f32.mrf.mxu0
        %v1337 = vadd.f32 0.0, %v1336
        %v1338 = vpop.f32.mrf.mxu0
        %v1339 = vadd.f32 0.0, %v1338
        %1340 = vmatmul.bf16.gmra.mxu0 %v1147
        %v1341 = vpop.f32.mrf.mxu0
        %v1342 = vadd.f32 0.0, %v1341
        %v1343 = vpop.f32.mrf.mxu0
        %v1344 = vadd.f32 0.0, %v1343
        %1345 = vdwg.mxu0
        %1346 = vmatpush.bf16.msra.mxu0 %v1274
        %1347 = vmatpush.bf16.msra.mxu0 %v1270
        %1348 = vmatpush.bf16.msra.mxu0 %v1266
        %1349 = vmatpush.bf16.msra.mxu0 %v1262
        %1350 = vmatpush.bf16.msra.mxu0 %v1258
        %1351 = vmatpush.bf16.msra.mxu0 %v1254
        %1352 = vmatpush.bf16.msra.mxu0 %v1250
        %1353 = vmatpush.bf16.msra.mxu0 %v1246
        %1354 = vmatmul.bf16.gmra.mxu0 %v1146
        %v1355 = vpop.f32.mrf.mxu0
        %v1356 = vadd.f32 0.0, %v1355
        %v1357 = vpop.f32.mrf.mxu0
        %v1358 = vadd.f32 0.0, %v1357
        %1359 = vmatmul.bf16.gmra.mxu0 %v1147
        %v1360 = vpop.f32.mrf.mxu0
        %v1361 = vadd.f32 0.0, %v1360
        %v1362 = vpop.f32.mrf.mxu0
        %v1363 = vadd.f32 0.0, %v1362
        %1364 = vdwg.mxu0
        %1365 = vmatpush.bf16.msra.mxu0 %v1275
        %1366 = vmatpush.bf16.msra.mxu0 %v1271
        %1367 = vmatpush.bf16.msra.mxu0 %v1267
        %1368 = vmatpush.bf16.msra.mxu0 %v1263
        %1369 = vmatpush.bf16.msra.mxu0 %v1259
        %1370 = vmatpush.bf16.msra.mxu0 %v1255
        %1371 = vmatpush.bf16.msra.mxu0 %v1251
        %1372 = vmatpush.bf16.msra.mxu0 %v1247
        %1373 = vmatmul.bf16.gmra.mxu0 %v1146
        %v1374 = vpop.f32.mrf.mxu0
        %v1375 = vadd.f32 0.0, %v1374
        %v1376 = vpop.f32.mrf.mxu0
        %v1377 = vadd.f32 0.0, %v1376
        %1378 = vmatmul.bf16.gmra.mxu0 %v1147
        %v1379 = vpop.f32.mrf.mxu0
        %v1380 = vadd.f32 0.0, %v1379
        %v1381 = vpop.f32.mrf.mxu0
        %v1382 = vadd.f32 0.0, %v1381
        %1383 = vdwg.mxu0
        %v1384 = vxor.u32 %v1318, 2147483648
        %v1385 = vxor.u32 %v1337, 2147483648
        %v1386 = vxor.u32 %v1320, 2147483648
        %v1387 = vxor.u32 %v1339, 2147483648
        %v1388 = vxor.u32 %v1323, 2147483648
        %v1389 = vxor.u32 %v1342, 2147483648
        %v1390 = vxor.u32 %v1325, 2147483648
        %v1391 = vxor.u32 %v1344, 2147483648
        %v1392 = vmul.f32 %v1384, 1.442695
        %v1393 = vpow.pop %v1392
        %v1394 = vmul.f32 %v1385, 1.442695
        %v1395 = vpow.pop %v1394
        %v1396 = vmul.f32 %v1386, 1.442695
        %v1397 = vpow.pop %v1396
        %v1398 = vmul.f32 %v1387, 1.442695
        %v1399 = vpow.pop %v1398
        %v1400 = vmul.f32 %v1388, 1.442695
        %v1401 = vpow.pop %v1400
        %v1402 = vmul.f32 %v1389, 1.442695
        %v1403 = vpow.pop %v1402
        %v1404 = vmul.f32 %v1390, 1.442695
        %v1405 = vpow.pop %v1404
        %v1406 = vmul.f32 %v1391, 1.442695
        %v1407 = vpow.pop %v1406
        %v1408 = vadd.f32 %v1393, 1.0
        %v1409 = vadd.f32 %v1395, 1.0
        %v1410 = vadd.f32 %v1397, 1.0
        %v1411 = vadd.f32 %v1399, 1.0
        %v1412 = vadd.f32 %v1401, 1.0
        %v1413 = vadd.f32 %v1403, 1.0
        %v1414 = vadd.f32 %v1405, 1.0
        %v1415 = vadd.f32 %v1407, 1.0
        %v1416 = vrcp.pop %v1408
        %v1417 = vmul.f32 %v1408, %v1416
        %v1418 = vsub.f32 1.0, %v1417
        %v1419 = vmul.f32 %v1416, %v1418
        %v1420 = vadd.f32 %v1416, %v1419
        %vm1421 = vweird.f32 %v1408
        %vm1422 = vweird.f32 %v1416
        %vm1423 = vmor %vm1421, %vm1422
        %v1424 = vsel %vm1423, %v1416, %v1420
        %v1425 = vand.u32 2147483647, %v1408
        %vm1426 = vcmp.eq.f32.partialorder %v1425, 8.507059e+37
        %v1427 = vand.u32 %v1408, 2147483648
        %v1428 = vor.u32 1.1754944e-38, %v1427
        %v1429 = vsel %vm1426, %v1428, %v1424
        %v1430 = vmul.f32 1.0, %v1429
        %v1431 = vrcp.pop %v1409
        %v1432 = vmul.f32 %v1409, %v1431
        %v1433 = vsub.f32 1.0, %v1432
        %v1434 = vmul.f32 %v1431, %v1433
        %v1435 = vadd.f32 %v1431, %v1434
        %vm1436 = vweird.f32 %v1409
        %vm1437 = vweird.f32 %v1431
        %vm1438 = vmor %vm1436, %vm1437
        %v1439 = vsel %vm1438, %v1431, %v1435
        %v1440 = vand.u32 2147483647, %v1409
        %vm1441 = vcmp.eq.f32.partialorder %v1440, 8.507059e+37
        %v1442 = vand.u32 %v1409, 2147483648
        %v1443 = vor.u32 1.1754944e-38, %v1442
        %v1444 = vsel %vm1441, %v1443, %v1439
        %v1445 = vmul.f32 1.0, %v1444
        %v1446 = vrcp.pop %v1410
        %v1447 = vmul.f32 %v1410, %v1446
        %v1448 = vsub.f32 1.0, %v1447
        %v1449 = vmul.f32 %v1446, %v1448
        %v1450 = vadd.f32 %v1446, %v1449
        %vm1451 = vweird.f32 %v1410
        %vm1452 = vweird.f32 %v1446
        %vm1453 = vmor %vm1451, %vm1452
        %v1454 = vsel %vm1453, %v1446, %v1450
        %v1455 = vand.u32 2147483647, %v1410
        %vm1456 = vcmp.eq.f32.partialorder %v1455, 8.507059e+37
        %v1457 = vand.u32 %v1410, 2147483648
        %v1458 = vor.u32 1.1754944e-38, %v1457
        %v1459 = vsel %vm1456, %v1458, %v1454
        %v1460 = vmul.f32 1.0, %v1459
        %v1461 = vrcp.pop %v1411
        %v1462 = vmul.f32 %v1411, %v1461
        %v1463 = vsub.f32 1.0, %v1462
        %v1464 = vmul.f32 %v1461, %v1463
        %v1465 = vadd.f32 %v1461, %v1464
        %vm1466 = vweird.f32 %v1411
        %vm1467 = vweird.f32 %v1461
        %vm1468 = vmor %vm1466, %vm1467
        %v1469 = vsel %vm1468, %v1461, %v1465
        %v1470 = vand.u32 2147483647, %v1411
        %vm1471 = vcmp.eq.f32.partialorder %v1470, 8.507059e+37
        %v1472 = vand.u32 %v1411, 2147483648
        %v1473 = vor.u32 1.1754944e-38, %v1472
        %v1474 = vsel %vm1471, %v1473, %v1469
        %v1475 = vmul.f32 1.0, %v1474
        %v1476 = vrcp.pop %v1412
        %v1477 = vmul.f32 %v1412, %v1476
        %v1478 = vsub.f32 1.0, %v1477
        %v1479 = vmul.f32 %v1476, %v1478
        %v1480 = vadd.f32 %v1476, %v1479
        %vm1481 = vweird.f32 %v1412
        %vm1482 = vweird.f32 %v1476
        %vm1483 = vmor %vm1481, %vm1482
        %v1484 = vsel %vm1483, %v1476, %v1480
        %v1485 = vand.u32 2147483647, %v1412
        %vm1486 = vcmp.eq.f32.partialorder %v1485, 8.507059e+37
        %v1487 = vand.u32 %v1412, 2147483648
        %v1488 = vor.u32 1.1754944e-38, %v1487
        %v1489 = vsel %vm1486, %v1488, %v1484
        %v1490 = vmul.f32 1.0, %v1489
        %v1491 = vrcp.pop %v1413
        %v1492 = vmul.f32 %v1413, %v1491
        %v1493 = vsub.f32 1.0, %v1492
        %v1494 = vmul.f32 %v1491, %v1493
        %v1495 = vadd.f32 %v1491, %v1494
        %vm1496 = vweird.f32 %v1413
        %vm1497 = vweird.f32 %v1491
        %vm1498 = vmor %vm1496, %vm1497
        %v1499 = vsel %vm1498, %v1491, %v1495
        %v1500 = vand.u32 2147483647, %v1413
        %vm1501 = vcmp.eq.f32.partialorder %v1500, 8.507059e+37
        %v1502 = vand.u32 %v1413, 2147483648
        %v1503 = vor.u32 1.1754944e-38, %v1502
        %v1504 = vsel %vm1501, %v1503, %v1499
        %v1505 = vmul.f32 1.0, %v1504
        %v1506 = vrcp.pop %v1414
        %v1507 = vmul.f32 %v1414, %v1506
        %v1508 = vsub.f32 1.0, %v1507
        %v1509 = vmul.f32 %v1506, %v1508
        %v1510 = vadd.f32 %v1506, %v1509
        %vm1511 = vweird.f32 %v1414
        %vm1512 = vweird.f32 %v1506
        %vm1513 = vmor %vm1511, %vm1512
        %v1514 = vsel %vm1513, %v1506, %v1510
        %v1515 = vand.u32 2147483647, %v1414
        %vm1516 = vcmp.eq.f32.partialorder %v1515, 8.507059e+37
        %v1517 = vand.u32 %v1414, 2147483648
        %v1518 = vor.u32 1.1754944e-38, %v1517
        %v1519 = vsel %vm1516, %v1518, %v1514
        %v1520 = vmul.f32 1.0, %v1519
        %v1521 = vrcp.pop %v1415
        %v1522 = vmul.f32 %v1415, %v1521
        %v1523 = vsub.f32 1.0, %v1522
        %v1524 = vmul.f32 %v1521, %v1523
        %v1525 = vadd.f32 %v1521, %v1524
        %vm1526 = vweird.f32 %v1415
        %vm1527 = vweird.f32 %v1521
        %vm1528 = vmor %vm1526, %vm1527
        %v1529 = vsel %vm1528, %v1521, %v1525
        %v1530 = vand.u32 2147483647, %v1415
        %vm1531 = vcmp.eq.f32.partialorder %v1530, 8.507059e+37
        %v1532 = vand.u32 %v1415, 2147483648
        %v1533 = vor.u32 1.1754944e-38, %v1532
        %v1534 = vsel %vm1531, %v1533, %v1529
        %v1535 = vmul.f32 1.0, %v1534
        %v1536 = vmul.f32 %v1318, %v1430
        %v1537 = vmul.f32 %v1337, %v1445
        %v1538 = vmul.f32 %v1320, %v1460
        %v1539 = vmul.f32 %v1339, %v1475
        %v1540 = vmul.f32 %v1323, %v1490
        %v1541 = vmul.f32 %v1342, %v1505
        %v1542 = vmul.f32 %v1325, %v1520
        %v1543 = vmul.f32 %v1344, %v1535
        %v1544 = vmul.f32 %v1536, %v1356
        %v1545 = vmul.f32 %v1537, %v1375
        %v1546 = vmul.f32 %v1538, %v1358
        %v1547 = vmul.f32 %v1539, %v1377
        %v1548 = vmul.f32 %v1540, %v1361
        %v1549 = vmul.f32 %v1541, %v1380
        %v1550 = vmul.f32 %v1542, %v1363
        %v1551 = vmul.f32 %v1543, %v1382
        %v1552 = vld [vmem:[#allocation7] sm:$0xf]
        %v1553 = vld [vmem:[#allocation7 + $0x4] sm:$0xf]
        %v1554 = vld [vmem:[#allocation7 + $0x8] sm:$0xf]
        %v1555 = vld [vmem:[#allocation7 + $0xc] sm:$0xf]
        %v1556 = vld [vmem:[#allocation7 + $0x10] sm:$0xf]
        %v1557 = vld [vmem:[#allocation7 + $0x14] sm:$0xf]
        %v1558 = vld [vmem:[#allocation7 + $0x18] sm:$0xf]
        %v1559 = vld [vmem:[#allocation7 + $0x1c] sm:$0xf]
        %v1560 = vld [vmem:[#allocation7 + $0x20] sm:$0xf]
        %v1561 = vld [vmem:[#allocation7 + $0x24] sm:$0xf]
        %v1562 = vld [vmem:[#allocation7 + $0x28] sm:$0xf]
        %v1563 = vld [vmem:[#allocation7 + $0x2c] sm:$0xf]
        %v1564 = vld [vmem:[#allocation7 + $0x30] sm:$0xf]
        %v1565 = vld [vmem:[#allocation7 + $0x34] sm:$0xf]
        %v1566 = vld [vmem:[#allocation7 + $0x38] sm:$0xf]
        %v1567 = vld [vmem:[#allocation7 + $0x3c] sm:$0xf]
        %v1568 = vld [vmem:[#allocation7 + $0x40] sm:$0xf]
        %v1569 = vld [vmem:[#allocation7 + $0x44] sm:$0xf]
        %v1570 = vld [vmem:[#allocation7 + $0x48] sm:$0xf]
        %v1571 = vld [vmem:[#allocation7 + $0x4c] sm:$0xf]
        %v1572 = vld [vmem:[#allocation7 + $0x50] sm:$0xf]
        %v1573 = vld [vmem:[#allocation7 + $0x54] sm:$0xf]
        %v1574 = vld [vmem:[#allocation7 + $0x58] sm:$0xf]
        %v1575 = vld [vmem:[#allocation7 + $0x5c] sm:$0xf]
        %v1576 = vld [vmem:[#allocation7 + $0x60] sm:$0xf]
        %v1577 = vld [vmem:[#allocation7 + $0x64] sm:$0xf]
        %v1578 = vld [vmem:[#allocation7 + $0x68] sm:$0xf]
        %v1579 = vld [vmem:[#allocation7 + $0x6c] sm:$0xf]
        %v1580 = vld [vmem:[#allocation7 + $0x70] sm:$0xf]
        %v1581 = vld [vmem:[#allocation7 + $0x74] sm:$0xf]
        %v1582 = vld [vmem:[#allocation7 + $0x78] sm:$0xf]
        %v1583 = vld [vmem:[#allocation7 + $0x7c] sm:$0xf]
        %v1584 = vpack.c.bf16 %v1546, %v1544
        %v1585 = vpack.c.bf16 %v1547, %v1545
        %v1586 = vpack.c.bf16 %v1550, %v1548
        %v1587 = vpack.c.bf16 %v1551, %v1549
        %v1620 = vunpack.c.l.b16 %v1552
        %v1621 = vunpack.c.l.b16 %v1553
        %v1622 = vunpack.c.l.b16 %v1554
        %v1623 = vunpack.c.l.b16 %v1555
        %v1624 = vunpack.c.l.b16 %v1556
        %v1625 = vunpack.c.l.b16 %v1557
        %v1626 = vunpack.c.l.b16 %v1558
        %v1627 = vunpack.c.l.b16 %v1559
        %v1628 = vunpack.c.l.b16 %v1560
        %v1629 = vunpack.c.l.b16 %v1561
        %v1630 = vunpack.c.l.b16 %v1562
        %v1631 = vunpack.c.l.b16 %v1563
        %v1632 = vunpack.c.l.b16 %v1564
        %v1633 = vunpack.c.l.b16 %v1565
        %v1634 = vunpack.c.l.b16 %v1566
        %v1635 = vunpack.c.l.b16 %v1567
        %v1636 = vunpack.c.l.b16 %v1568
        %v1637 = vunpack.c.l.b16 %v1569
        %v1638 = vunpack.c.l.b16 %v1570
        %v1639 = vunpack.c.l.b16 %v1571
        %v1640 = vunpack.c.l.b16 %v1572
        %v1641 = vunpack.c.l.b16 %v1573
        %v1642 = vunpack.c.l.b16 %v1574
        %v1643 = vunpack.c.l.b16 %v1575
        %v1644 = vunpack.c.l.b16 %v1576
        %v1645 = vunpack.c.l.b16 %v1577
        %v1646 = vunpack.c.l.b16 %v1578
        %v1647 = vunpack.c.l.b16 %v1579
        %v1648 = vunpack.c.l.b16 %v1580
        %v1649 = vunpack.c.l.b16 %v1581
        %v1650 = vunpack.c.l.b16 %v1582
        %v1651 = vunpack.c.l.b16 %v1583
        %v1652 = vpack.c.b16 %v1621, %v1620
        %v1653 = vpack.c.b16 %v1623, %v1622
        %v1654 = vpack.c.b16 %v1625, %v1624
        %v1655 = vpack.c.b16 %v1627, %v1626
        %v1656 = vpack.c.b16 %v1629, %v1628
        %v1657 = vpack.c.b16 %v1631, %v1630
        %v1658 = vpack.c.b16 %v1633, %v1632
        %v1659 = vpack.c.b16 %v1635, %v1634
        %v1660 = vpack.c.b16 %v1637, %v1636
        %v1661 = vpack.c.b16 %v1639, %v1638
        %v1662 = vpack.c.b16 %v1641, %v1640
        %v1663 = vpack.c.b16 %v1643, %v1642
        %v1664 = vpack.c.b16 %v1645, %v1644
        %v1665 = vpack.c.b16 %v1647, %v1646
        %v1666 = vpack.c.b16 %v1649, %v1648
        %v1667 = vpack.c.b16 %v1651, %v1650
        %1684 = vmatpush.bf16.msra.mxu0 %v1659
        %1685 = vmatpush.bf16.msra.mxu0 %v1658
        %1686 = vmatpush.bf16.msra.mxu0 %v1657
        %1687 = vmatpush.bf16.msra.mxu0 %v1656
        %1688 = vmatpush.bf16.msra.mxu0 %v1655
        %1689 = vmatpush.bf16.msra.mxu0 %v1654
        %1690 = vmatpush.bf16.msra.mxu0 %v1653
        %1691 = vmatpush.bf16.msra.mxu0 %v1652
        %1692 = vmatmul.bf16.gmra.mxu0 %v1584
        %v1693 = vpop.f32.mrf.mxu0
        %v1694 = vadd.f32 0.0, %v1693
        %v1695 = vpop.f32.mrf.mxu0
        %v1696 = vadd.f32 0.0, %v1695
        %1697 = vmatmul.bf16.gmra.mxu0 %v1586
        %v1698 = vpop.f32.mrf.mxu0
        %v1699 = vadd.f32 0.0, %v1698
        %v1700 = vpop.f32.mrf.mxu0
        %v1701 = vadd.f32 0.0, %v1700
        %1702 = vdwg.mxu0
        %1703 = vmatpush.bf16.msra.mxu0 %v1667
        %1704 = vmatpush.bf16.msra.mxu0 %v1666
        %1705 = vmatpush.bf16.msra.mxu0 %v1665
        %1706 = vmatpush.bf16.msra.mxu0 %v1664
        %1707 = vmatpush.bf16.msra.mxu0 %v1663
        %1708 = vmatpush.bf16.msra.mxu0 %v1662
        %1709 = vmatpush.bf16.msra.mxu0 %v1661
        %1710 = vmatpush.bf16.msra.mxu0 %v1660
        %1711 = vmatmul.bf16.gmra.mxu0 %v1585
        %v1712 = vpop.f32.mrf.mxu0
        %v1713 = vadd.f32 %v1694, %v1712
        %v1714 = vpop.f32.mrf.mxu0
        %v1715 = vadd.f32 %v1696, %v1714
        %1716 = vmatmul.bf16.gmra.mxu0 %v1587
        %v1717 = vpop.f32.mrf.mxu0
        %v1718 = vadd.f32 %v1699, %v1717
        %v1719 = vpop.f32.mrf.mxu0
        %v1720 = vadd.f32 %v1701, %v1719
        %1721 = vdwg.mxu0
        %v1722 = vadd.f32 %v1041, %v1713
        %v1723 = vadd.f32 %v1042, %v1715
        %v1724 = vadd.f32 %v1043, %v1718
        %v1725 = vadd.f32 %v1044, %v1720
        %v1726 = vmul.f32 %v1722, %v1722
        %v1727 = vmul.f32 %v1723, %v1723
        %v1728 = vmul.f32 %v1724, %v1724
        %v1729 = vmul.f32 %v1725, %v1725
        %1730 = vadd.xlane.f32.xlu0 %v1726
        %v1731 = vpop.xlane.xlu0 %1730
        %1732 = vadd.xlane.f32.xlu0 %v1727
        %v1733 = vpop.xlane.xlu0 %1732
        %1734 = vadd.xlane.f32.xlu0 %v1728
        %v1735 = vpop.xlane.xlu0 %1734
        %1736 = vadd.xlane.f32.xlu0 %v1729
        %v1737 = vpop.xlane.xlu0 %1736
        %v1738 = vmul.f32 %v1731, %v568
        %v1739 = vmul.f32 %v1733, %v568
        %v1740 = vmul.f32 %v1735, %v568
        %v1741 = vmul.f32 %v1737, %v568
        %v1742 = vadd.f32 %v1738, 1e-06
        %v1743 = vadd.f32 %v1739, 1e-06
        %v1744 = vadd.f32 %v1740, 1e-06
        %v1745 = vadd.f32 %v1741, 1e-06
        %v1746 = vrsqrt.pop %v1742
        %v1747 = vmul.f32 %v1746, %v1742
        %v1748 = vmul.f32 %v1747, %v1746
        %v1749 = vmul.f32 0.5, %v1748
        %v1750 = vsub.f32 1.5, %v1749
        %v1751 = vmul.f32 %v1746, %v1750
        %vm1752 = vweird.f32 %v1742
        %vm1753 = vweird.f32 %v1746
        %vm1754 = vmor %vm1752, %vm1753
        %v1755 = vsel %vm1754, %v1746, %v1751
        %v1756 = vrsqrt.pop %v1743
        %v1757 = vmul.f32 %v1756, %v1743
        %v1758 = vmul.f32 %v1757, %v1756
        %v1759 = vmul.f32 0.5, %v1758
        %v1760 = vsub.f32 1.5, %v1759
        %v1761 = vmul.f32 %v1756, %v1760
        %vm1762 = vweird.f32 %v1743
        %vm1763 = vweird.f32 %v1756
        %vm1764 = vmor %vm1762, %vm1763
        %v1765 = vsel %vm1764, %v1756, %v1761
        %v1766 = vrsqrt.pop %v1744
        %v1767 = vmul.f32 %v1766, %v1744
        %v1768 = vmul.f32 %v1767, %v1766
        %v1769 = vmul.f32 0.5, %v1768
        %v1770 = vsub.f32 1.5, %v1769
        %v1771 = vmul.f32 %v1766, %v1770
        %vm1772 = vweird.f32 %v1744
        %vm1773 = vweird.f32 %v1766
        %vm1774 = vmor %vm1772, %vm1773
        %v1775 = vsel %vm1774, %v1766, %v1771
        %v1776 = vrsqrt.pop %v1745
        %v1777 = vmul.f32 %v1776, %v1745
        %v1778 = vmul.f32 %v1777, %v1776
        %v1779 = vmul.f32 0.5, %v1778
        %v1780 = vsub.f32 1.5, %v1779
        %v1781 = vmul.f32 %v1776, %v1780
        %vm1782 = vweird.f32 %v1745
        %vm1783 = vweird.f32 %v1776
        %vm1784 = vmor %vm1782, %vm1783
        %v1785 = vsel %vm1784, %v1776, %v1781
        %v1786 = vmul.f32 %v1722, %v1755
        %v1787 = vmul.f32 %v1723, %v1765
        %v1788 = vmul.f32 %v1724, %v1775
        %v1789 = vmul.f32 %v1725, %v1785
        %v1790 = vperm.slane %v370, 2
        %v1791 = vmul.f32 %v1786, %v1790
        %v1792 = vmul.f32 %v1787, %v1790
        %v1793 = vmul.f32 %v1788, %v1790
        %v1794 = vmul.f32 %v1789, %v1790
        %s1795 = scalar_lea.vmem [#allocation2], 128
        %v1796 = vld [vmem:[%s1795] sm:$0xf]
        %v1797 = vld [vmem:[%s1795 + $0x4] sm:$0xf]
        %v1798 = vld [vmem:[%s1795 + $0x8] sm:$0xf]
        %v1799 = vld [vmem:[%s1795 + $0xc] sm:$0xf]
        %v1800 = vld [vmem:[%s1795 + $0x10] sm:$0xf]
        %v1801 = vld [vmem:[%s1795 + $0x14] sm:$0xf]
        %v1802 = vld [vmem:[%s1795 + $0x18] sm:$0xf]
        %v1803 = vld [vmem:[%s1795 + $0x1c] sm:$0xf]
        %v1804 = vld [vmem:[%s1795 + $0x20] sm:$0xf]
        %v1805 = vld [vmem:[%s1795 + $0x24] sm:$0xf]
        %v1806 = vld [vmem:[%s1795 + $0x28] sm:$0xf]
        %v1807 = vld [vmem:[%s1795 + $0x2c] sm:$0xf]
        %v1808 = vld [vmem:[%s1795 + $0x30] sm:$0xf]
        %v1809 = vld [vmem:[%s1795 + $0x34] sm:$0xf]
        %v1810 = vld [vmem:[%s1795 + $0x38] sm:$0xf]
        %v1811 = vld [vmem:[%s1795 + $0x3c] sm:$0xf]
        %v1812 = vpack.c.bf16 %v1792, %v1791
        %v1813 = vpack.c.bf16 %v1794, %v1793
        %v1830 = vunpack.c.l.b16 %v1796
        %v1831 = vunpack.c.l.b16 %v1797
        %v1832 = vunpack.c.l.b16 %v1798
        %v1833 = vunpack.c.l.b16 %v1799
        %v1834 = vunpack.c.l.b16 %v1800
        %v1835 = vunpack.c.l.b16 %v1801
        %v1836 = vunpack.c.l.b16 %v1802
        %v1837 = vunpack.c.l.b16 %v1803
        %v1838 = vunpack.c.l.b16 %v1804
        %v1839 = vunpack.c.l.b16 %v1805
        %v1840 = vunpack.c.l.b16 %v1806
        %v1841 = vunpack.c.l.b16 %v1807
        %v1842 = vunpack.c.l.b16 %v1808
        %v1843 = vunpack.c.l.b16 %v1809
        %v1844 = vunpack.c.l.b16 %v1810
        %v1845 = vunpack.c.l.b16 %v1811
        %v1846 = vpack.c.b16 %v1831, %v1830
        %v1847 = vpack.c.b16 %v1833, %v1832
        %v1848 = vpack.c.b16 %v1835, %v1834
        %v1849 = vpack.c.b16 %v1837, %v1836
        %v1850 = vpack.c.b16 %v1839, %v1838
        %v1851 = vpack.c.b16 %v1841, %v1840
        %v1852 = vpack.c.b16 %v1843, %v1842
        %v1853 = vpack.c.b16 %v1845, %v1844
        %1862 = vmatpush.bf16.msra.mxu0 %v1853
        %1863 = vmatpush.bf16.msra.mxu0 %v1852
        %1864 = vmatpush.bf16.msra.mxu0 %v1851
        %1865 = vmatpush.bf16.msra.mxu0 %v1850
        %1866 = vmatpush.bf16.msra.mxu0 %v1849
        %1867 = vmatpush.bf16.msra.mxu0 %v1848
        %1868 = vmatpush.bf16.msra.mxu0 %v1847
        %1869 = vmatpush.bf16.msra.mxu0 %v1846
        %1870 = vmatmul.bf16.gmra.mxu0 %v1812
        %v1871 = vpop.f32.mrf.mxu0
        %v1872 = vadd.f32 0.0, %v1871
        %v1873 = vpop.f32.mrf.mxu0
        %v1874 = vadd.f32 0.0, %v1873
        %1875 = vmatmul.bf16.gmra.mxu0 %v1813
        %v1876 = vpop.f32.mrf.mxu0
        %v1877 = vadd.f32 0.0, %v1876
        %v1878 = vpop.f32.mrf.mxu0
        %v1879 = vadd.f32 0.0, %v1878
        %1880 = vdwg.mxu0
        %1881 = vmax.xlane.f32.xlu0 %v1872
        %v1882 = vpop.xlane.xlu0 %1881
        %1883 = vmax.xlane.f32.xlu0 %v1874
        %v1884 = vpop.xlane.xlu0 %1883
        %1885 = vmax.xlane.f32.xlu0 %v1877
        %v1886 = vpop.xlane.xlu0 %1885
        %1887 = vmax.xlane.f32.xlu0 %v1879
        %v1888 = vpop.xlane.xlu0 %1887
        %v1889 = vsub.f32 %v1872, %v1882
        %v1890 = vsub.f32 %v1874, %v1884
        %v1891 = vsub.f32 %v1877, %v1886
        %v1892 = vsub.f32 %v1879, %v1888
        %v1893 = vmul.f32 %v1889, 1.442695
        %v1894 = vpow.pop %v1893
        %v1895 = vmul.f32 %v1890, 1.442695
        %v1896 = vpow.pop %v1895
        %v1897 = vmul.f32 %v1891, 1.442695
        %v1898 = vpow.pop %v1897
        %v1899 = vmul.f32 %v1892, 1.442695
        %v1900 = vpow.pop %v1899
        %1901 = vadd.xlane.f32.xlu0 %v1894
        %v1902 = vpop.xlane.xlu0 %1901
        %1903 = vadd.xlane.f32.xlu0 %v1896
        %v1904 = vpop.xlane.xlu0 %1903
        %1905 = vadd.xlane.f32.xlu0 %v1898
        %v1906 = vpop.xlane.xlu0 %1905
        %1907 = vadd.xlane.f32.xlu0 %v1900
        %v1908 = vpop.xlane.xlu0 %1907
        %v1909 = vlog2.pop %v1902
        %v1910 = vmul.f32 %v1909, 0.6931472
        %v1911 = vlog2.pop %v1904
        %v1912 = vmul.f32 %v1911, 0.6931472
        %v1913 = vlog2.pop %v1906
        %v1914 = vmul.f32 %v1913, 0.6931472
        %v1915 = vlog2.pop %v1908
        %v1916 = vmul.f32 %v1915, 0.6931472
        %v1917 = vadd.f32 %v1882, %v1910
        %v1918 = vadd.f32 %v1884, %v1912
        %v1919 = vadd.f32 %v1886, %v1914
        %v1920 = vadd.f32 %v1888, %v1916
        %1921 = vset.pattern.permute.xlu0 1
        %1922 = vperm.xlu0 %1921, %v371
        %v1923 = vpop.permute.xlu0 %1922
        %1924 = vset.pattern.permute.xlu0 1
        %1925 = vperm.xlu0 %1924, %v372
        %v1926 = vpop.permute.xlu0 %1925
        %1927 = vset.pattern.permute.xlu0 1
        %1928 = vperm.xlu0 %1927, %v373
        %v1929 = vpop.permute.xlu0 %1928
        %1930 = vset.pattern.permute.xlu0 1
        %1931 = vperm.xlu0 %1930, %v374
        %v1932 = vpop.permute.xlu0 %1931
        %vm1933 = vcmp.eq.s32.totalorder %v376, %v1923
        %vm1934 = vcmp.eq.s32.totalorder %v376, %v1926
        %vm1935 = vcmp.eq.s32.totalorder %v376, %v1929
        %vm1936 = vcmp.eq.s32.totalorder %v376, %v1932
        %v1937 = vsel %vm1933, %v1872, 0.0
        %v1938 = vsel %vm1934, %v1874, 0.0
        %v1939 = vsel %vm1935, %v1877, 0.0
        %v1940 = vsel %vm1936, %v1879, 0.0
        %1941 = vadd.xlane.f32.xlu0 %v1937
        %v1942 = vpop.xlane.xlu0 %1941
        %1943 = vadd.xlane.f32.xlu0 %v1938
        %v1944 = vpop.xlane.xlu0 %1943
        %1945 = vadd.xlane.f32.xlu0 %v1939
        %v1946 = vpop.xlane.xlu0 %1945
        %1947 = vadd.xlane.f32.xlu0 %v1940
        %v1948 = vpop.xlane.xlu0 %1947
        %vm1949 = vcmp.ne.s32.totalorder %v371, 4294967096
        %vm1950 = vcmp.ne.s32.totalorder %v372, 4294967096
        %vm1951 = vcmp.ne.s32.totalorder %v373, 4294967096
        %vm1952 = vcmp.ne.s32.totalorder %v374, 4294967096
        %v1953 = vsel %vm1949, 1, 0
        %v1954 = vsel %vm1950, 1, 0
        %v1955 = vsel %vm1951, 1, 0
        %v1956 = vsel %vm1952, 1, 0
        %v1957 = vcvt.s32.f32 %v1953
        %v1958 = vcvt.s32.f32 %v1954
        %v1959 = vcvt.s32.f32 %v1955
        %v1960 = vcvt.s32.f32 %v1956
        %v1961 = vsub.f32 %v1917, %v1942
        %v1962 = vsub.f32 %v1918, %v1944
        %v1963 = vsub.f32 %v1919, %v1946
        %v1964 = vsub.f32 %v1920, %v1948
        %v1965 = vmul.f32 %v1961, %v1957
        %v1966 = vmul.f32 %v1962, %v1958
        %v1967 = vmul.f32 %v1963, %v1959
        %v1968 = vmul.f32 %v1964, %v1960
        %vm1969 = vcmask 15368
        %v1970 = vsel %vm1969, %v1965, 0.0
        %v1971 = vsel %vm1969, %v1966, 0.0
        %v1972 = vadd.f32 %v1970, %v1971
        %v1973 = vsel %vm1969, %v1967, 0.0
        %v1974 = vadd.f32 %v1972, %v1973
        %v1975 = vsel %vm1969, %v1968, 0.0
        %v1976 = vadd.f32 %v1974, %v1975
        %v1977 = vrot.slane %v1976, 4
        %v1978 = vadd.f32 %v1976, %v1977
        %v1979 = vrot.slane %v1978, 2
        %v1980 = vadd.f32 %v1978, %v1979
        %v1981 = vrot.slane %v1980, 1
        %v1982 = vadd.f32 %v1980, %v1981
        %v1983 = vsel %vm1969, %v1957, 0.0
        %v1984 = vsel %vm1969, %v1958, 0.0
        %v1985 = vadd.f32 %v1983, %v1984
        %v1986 = vsel %vm1969, %v1959, 0.0
        %v1987 = vadd.f32 %v1985, %v1986
        %v1988 = vsel %vm1969, %v1960, 0.0
        %v1989 = vadd.f32 %v1987, %v1988
        %v1990 = vrot.slane %v1989, 4
        %v1991 = vadd.f32 %v1989, %v1990
        %v1992 = vrot.slane %v1991, 2
        %v1993 = vadd.f32 %v1991, %v1992
        %v1994 = vrot.slane %v1993, 1
        %v1995 = vadd.f32 %v1993, %v1994
        %v1996 = vmax.f32 %v1995, 1.0
        %v1997 = vrcp.pop %v1996
        %v1998 = vmul.f32 %v1996, %v1997
        %v1999 = vsub.f32 1.0, %v1998
        %v2000 = vmul.f32 %v1997, %v1999
        %v2001 = vadd.f32 %v1997, %v2000
        %vm2002 = vweird.f32 %v1996
        %vm2003 = vweird.f32 %v1997
        %vm2004 = vmor %vm2002, %vm2003
        %v2005 = vsel %vm2004, %v1997, %v2001
        %v2006 = vand.u32 2147483647, %v1996
        %vm2007 = vcmp.eq.f32.partialorder %v2006, 8.507059e+37
        %v2008 = vand.u32 %v1996, 2147483648
        %v2009 = vor.u32 1.1754944e-38, %v2008
        %v2010 = vsel %vm2007, %v2009, %v2005
        %v2011 = vmul.f32 %v1982, %v2010
        %2013 = vrot.lane.b32.xlu0 %v2011, 127
        %v2014 = vpop.permute.xlu0 %2013
        %vm2016 = vcmask 0
        %2017 = vst.msk [vmem:[%s368] sm:$0x1] %vm2016, %v2014
        %p2018 = scmp.lt.s32.totalorder %s22, 1
        %s2019 = scalar_select %p2018, %s22, 1
        %s2020 = scalar_lea.vmem %s8, %s2019
        // Predicated region
        $region69: #{tpu_custom_call.1} parent=51 // pred_check
          %p2021 = pneg %p213
        $region70: #{tpu_custom_call.1} parent=51 // pred_check_branch
          %2023 = sbr.rel (%p2021) target = $region72
        $region71: #{tpu_custom_call.1} parent=51 // pred_region
          _
        $region72: #{tpu_custom_call.1} parent=51 // pred_fallthru
          _
      $region52: #{tpu_custom_call.1} parent=5 // pred_fallthru
        _
      %p2024 = scmp.le.s32.totalorder 2, %s17
      // Predicated region
      $region73: #{tpu_custom_call.1} parent=5 // pred_check
        %p2025 = pneg %p2024
      $region74: #{tpu_custom_call.1} parent=5 // pred_check_branch
        %2027 = sbr.rel (%p2025) target = $region76
      $region75: #{tpu_custom_call.1} parent=5 // pred_region
        %s2028 = ssub.s32 %s17, 2
        // Predicated region
        $region77: #{tpu_custom_call.1} parent=75 // pred_check
          %p2029 = pneg %p219
        $region78: #{tpu_custom_call.1} parent=75 // pred_check_branch
          %2031 = sbr.rel (%p2029) target = $region80
        $region79: #{tpu_custom_call.1} parent=75 // pred_region
          %p2032 = scmp.lt.s32.totalorder %s23, 1
          %s2033 = scalar_select %p2032, %s23, 1
          %s2034 = scalar_lea.vmem %s8, %s2033
        $region80: #{tpu_custom_call.1} parent=75 // pred_fallthru
          _
      $region76: #{tpu_custom_call.1} parent=5 // pred_fallthru
        _
    $region6: #{tpu_custom_call.1} parent=1 // loop_footer
      %s21 = sadd.s32 1, %s17
    $region7: #{tpu_custom_call.1} parent=1 // loop_footer_branch
      %16 = sbr.rel target = $region3
    $region8: #{tpu_custom_call.1} parent=1 // loop_exit
      _
    %2035 = vsyncpa [#allocation3], 1
    %s2036 = scalar_lea.sflag [#allocation3], 1
    %2037 = vsyncpa %s2036, 1
    %2038 = vsyncpa [#allocation5], 1
    %2039 = vsyncpa [#allocation8], 1

</llo_original>
